<compile_context>
chip_gen: v7x
topology: tpu7x:2x2x1
jax: 0.10.0
libtpu: 0.0.40
codegen_flags: <defaults>
</compile_context>

<pallas_src>
import math
import functools

import jax
import jax.numpy as jnp
import numpy as np
from jax import lax
from jax.experimental import pallas as pl
from jax.experimental.pallas import tpu as pltpu


def _bounded_sin(x):
    """sin(x) for moderately bounded |x| (phases here are <= max(H,W)+pi/2).

    2-constant Cody-Waite reduction to [-pi, pi], fold to [-pi/2, pi/2] via
    sin(pi - r) = sin(r), then a degree-11 odd polynomial (abs err ~6e-8).
    Far fewer VPU ops than the generic jnp.sin lowering (full range reduction).
    """
    INV_2PI = 0.15915494309189535
    PI2_HI = 6.28125                 # few mantissa bits -> k*PI2_HI exact in f32
    PI2_LO = 0.001935307179586477    # 2*pi - PI2_HI
    PI = 3.141592653589793
    HALF_PI = 1.5707963267948966

    k = jnp.floor(x * INV_2PI + 0.5)
    r = (x - k * PI2_HI) - k * PI2_LO            # r in [-pi, pi] (+ tiny slop)
    pi_signed = jnp.where(r >= 0.0, PI, -PI)
    r = jnp.where(jnp.abs(r) > HALF_PI, pi_signed - r, r)   # -> [-pi/2, pi/2]
    r2 = r * r
    p = -2.5052108385441718e-08
    p = p * r2 + 2.7557319223985893e-06
    p = p * r2 - 1.9841269841269841e-04
    p = p * r2 + 8.3333333333333333e-03
    p = p * r2 - 1.6666666666666666e-01
    return r + r * (r2 * p)


def _pos_emb_kernel(mask_ref, lt_ref, ut_ref, coef_ref, out_ref, *,
                    num_pos_feats, rows_per_tile, normalize, scale):
    # mask_ref: (1, H, W)    bf16  (1.0 = masked / padding, 0.0 = valid), resident over h
    # lt_ref:   (Ht, H)      bf16  rows of the lower-triangular ones matrix (y cumsum)
    # ut_ref:   (W, W)       bf16  upper-triangular ones (x cumsum), resident
    # coef_ref: (2, Cp)      f32   row 0 = 1/dim_t tiled twice (zero-padded),
    #                              row 1 = +pi/2 on odd lanes (zero-padded)
    # out_ref:  (1, Ht, W, Cp)     output tile (lane dim Cp is a multiple of 128)
    H = mask_ref.shape[1]
    Cp = out_ref.shape[3]
    F = num_pos_feats
    Ht = rows_per_tile

    # Full (H, W) not-mask: RHS of the y-cumsum matmul (needed by every row tile).
    nm_full = (1.0 - mask_ref[0]).astype(jnp.bfloat16)

    # Rows belonging to this tile (for the x-cumsum along W).
    if Ht == H:
        nm_tile = nm_full
    else:
        row0 = pl.multiple_of(pl.program_id(1) * Ht, Ht)
        nm_tile = (1.0 - mask_ref[0, pl.ds(row0, Ht), :]).astype(jnp.bfloat16)

    # cumsum along H for this tile's rows:  lt_tile(Ht,H) @ not_mask(H,W)  (MXU, f32 acc)
    y_embed = jnp.dot(lt_ref[...], nm_full, preferred_element_type=jnp.float32)
    # cumsum along W for this tile's rows:  not_mask_tile(Ht,W) @ ut(W,W)
    x_embed = jnp.dot(nm_tile, ut_ref[...], preferred_element_type=jnp.float32)

    if normalize:
        eps = 1e-6
        # y denominator = full-H column sums (last row of the full cumsum).
        col_sum = jnp.sum(nm_full.astype(jnp.float32), axis=0, keepdims=True)   # (1, W)
        y_embed = y_embed * (scale / (col_sum + eps))
        # x denominator = full-W row sums = last column of this tile's x cumsum.
        x_embed = x_embed * (scale / (x_embed[:, -1:] + eps))

    # Lane-dense fused phase: channels [0,F) use y_embed, [F,2F) use x_embed,
    # padded lanes (>= 2F) have zero coefficients and are sliced off in the wrapper.
    lane = lax.broadcasted_iota(jnp.int32, (1, 1, Cp), 2)
    is_y = lane < F
    inv_dim_t2 = coef_ref[0:1, :]        # (1, Cp), broadcasts over (Ht, W, Cp)
    phase_off2 = coef_ref[1:2, :]        # (1, Cp): +pi/2 on odd-parity lanes

    # NOTE: the rank-expanding broadcasts below lower to per-(8,128)-tile splats;
    # keep them fused with the select so no (Ht,W,Cp) temporary is materialized twice.
    yx = jnp.where(is_y, y_embed[:, :, None], x_embed[:, :, None])   # (Ht, W, Cp)
    phase = yx * inv_dim_t2 + phase_off2
    # cos(x) = sin(x + pi/2): one bounded-domain sin polynomial per element.
    out_ref[0] = _bounded_sin(phase).astype(out_ref.dtype)


def position_embedding_sine(mask, num_pos_feats=64, temperature=10000,
                            normalize=False, scale=None, *,
                            out_dtype=jnp.float32, block_rows=None):
    """mask: [B, H, W] bool (True = padding). Returns [B, H, W, 2*num_pos_feats].

    out_dtype=jnp.bfloat16 halves the (writeback-bound on v5e) store traffic when
    the consumer accepts bf16 positional embeddings.  block_rows overrides the
    automatically chosen H tile (must divide H and be a multiple of 8, or == H).
    """
    if scale is not None and not normalize:
        raise ValueError("normalize should be True if scale is passed")
    if scale is None:
        scale = 2 * math.pi
    B, H, W = mask.shape
    F = int(num_pos_feats)
    C = 2 * F
    Cp = ((C + 127) // 128) * 128            # lane-pad channels -> unmasked vst
    out_itemsize = np.dtype(out_dtype).itemsize

    # ---- choose the H tile (rows per grid step) ------------------------------
    if block_rows is None:
        target_block_bytes = 4 * 2**20       # ~4 MiB output block per step
        rows_target = max(8, target_block_bytes // max(1, W * Cp * out_itemsize))
        if rows_target >= H:
            Ht = H
        else:
            cands = [d for d in range(8, H + 1, 8) if H % d == 0 and d <= rows_target]
            Ht = max(cands) if cands else H
    else:
        Ht = int(block_rows)
        if H % Ht != 0 or (Ht != H and Ht % 8 != 0):
            raise ValueError("block_rows must divide H and be a multiple of 8 (or equal H)")
    n_h_tiles = H // Ht

    # Input mask as bf16 (exact 0/1): 2 bytes/elem of DMA instead of 4.
    mask_bf16 = mask.astype(jnp.bfloat16)

    # Hoisted per-call constants (built once, resident across the sequential grid).
    lower_tri = jnp.tril(jnp.ones((H, H), jnp.float32)).astype(jnp.bfloat16)
    upper_tri = jnp.triu(jnp.ones((W, W), jnp.float32)).astype(jnp.bfloat16)

    idx = np.arange(F, dtype=np.float64)
    dim_t = float(temperature) ** (2.0 * np.floor(idx / 2.0) / float(F))
    inv_dim_t = (1.0 / dim_t).astype(np.float32)
    phase_off = np.where((np.arange(F) % 2) == 1,
                         np.float32(math.pi / 2.0), np.float32(0.0)).astype(np.float32)
    coef_np = np.zeros((2, Cp), np.float32)
    coef_np[0, :C] = np.tile(inv_dim_t, 2)
    coef_np[1, :C] = np.tile(phase_off, 2)
    coef = jnp.asarray(coef_np)

    kernel = functools.partial(
        _pos_emb_kernel,
        num_pos_feats=F,
        rows_per_tile=Ht,
        normalize=normalize,
        scale=float(scale),
    )

    # ---- VMEM budget clamped to the chip's real capacity ---------------------
    try:
        vmem_cap = int(pltpu.get_tpu_info().vmem_capacity_bytes)
    except Exception:
        vmem_cap = 64 * 2**20                # conservative default (v7x per-TC)
    out_block = Ht * W * Cp * out_itemsize
    est = (4 * out_block                     # double-buffered out + store staging
           + 4 * Ht * W * Cp * 4             # f32 phase / polynomial temporaries
           + 2 * (H * W + Ht * H + W * W) * 2
           + (2 << 20))
    vmem_limit = int(min(vmem_cap - (8 << 20), max(32 * 2**20, est)))

    out_full = pl.pallas_call(
        kernel,
        out_shape=jax.ShapeDtypeStruct((B, H, W, Cp), out_dtype),
        grid_spec=pltpu.PrefetchScalarGridSpec(
            num_scalar_prefetch=0,
            grid=(B, n_h_tiles),
            in_specs=[
                pl.BlockSpec((1, H, W), lambda b, h: (b, 0, 0)),   # mask (resident over h)
                pl.BlockSpec((Ht, H), lambda b, h: (h, 0)),        # lower-tri rows of tile
                pl.BlockSpec((W, W), lambda b, h: (0, 0)),         # upper-tri (resident)
                pl.BlockSpec((2, Cp), lambda b, h: (0, 0)),        # coef (resident)
            ],
            out_specs=pl.BlockSpec((1, Ht, W, Cp), lambda b, h: (b, h, 0, 0)),
        ),
        compiler_params=pltpu.CompilerParams(
            dimension_semantics=("parallel", "parallel"),
            vmem_limit_bytes=vmem_limit,
        ),
    )(mask_bf16, lower_tri, upper_tri, coef)

    if Cp != C:
        return out_full[..., :C]
    return out_full


def _reference(mask, num_pos_feats, temperature, normalize, scale):
    # Pure-JAX reference mirroring the PyTorch code exactly.
    not_mask = (~mask).astype(jnp.float32)
    y_embed = jnp.cumsum(not_mask, axis=1)
    x_embed = jnp.cumsum(not_mask, axis=2)
    if normalize:
        eps = 1e-6
        y_embed = y_embed / (y_embed[:, -1:, :] + eps) * scale
        x_embed = x_embed / (x_embed[:, :, -1:] + eps) * scale
    dim_t = jnp.arange(num_pos_feats, dtype=jnp.float32)
    dim_t = temperature ** (2 * (dim_t // 2) / num_pos_feats)
    pos_x = x_embed[..., None] / dim_t
    pos_y = y_embed[..., None] / dim_t
    B, H, W = mask.shape
    pos_x = jnp.stack((jnp.sin(pos_x[..., 0::2]), jnp.cos(pos_x[..., 1::2])), axis=4).reshape(B, H, W, -1)
    pos_y = jnp.stack((jnp.sin(pos_y[..., 0::2]), jnp.cos(pos_y[..., 1::2])), axis=4).reshape(B, H, W, -1)
    return jnp.concatenate((pos_y, pos_x), axis=3)


if __name__ == "__main__":
    key = jax.random.PRNGKey(0)
    B, H, W = 2, 16, 16
    num_pos_feats = 64
    temperature = 10000

    # True = padding (like DETR masks); random but deterministic.
    mask = jax.random.bernoulli(key, p=0.3, shape=(B, H, W))

    # Default config (normalize=False).
    out = position_embedding_sine(mask, num_pos_feats, temperature, normalize=False)
    out = jax.block_until_ready(out)
    ref = _reference(mask, num_pos_feats, temperature, normalize=False, scale=2 * math.pi)
    np.testing.assert_allclose(np.asarray(out), np.asarray(ref), rtol=1e-4, atol=1e-4)

    # Normalized config (normalize=True, scale=2*pi).
    out_n = position_embedding_sine(mask, num_pos_feats, temperature, normalize=True)
    out_n = jax.block_until_ready(out_n)
    ref_n = _reference(mask, num_pos_feats, temperature, normalize=True, scale=2 * math.pi)
    np.testing.assert_allclose(np.asarray(out_n), np.asarray(ref_n), rtol=1e-4, atol=1e-4)

    # Exercise the H-tiled path (2 row tiles of 8 rows) at the same small shape.
    out_t = position_embedding_sine(mask, num_pos_feats, temperature, normalize=True,
                                    block_rows=8)
    out_t = jax.block_until_ready(out_t)
    np.testing.assert_allclose(np.asarray(out_t), np.asarray(ref_n), rtol=1e-4, atol=1e-4)

    assert out.shape == (B, H, W, 2 * num_pos_feats)
    print("KERNEL_OK")
</pallas_src>

<mosaic_0001>
module attributes {stable_mosaic.version = 11 : i64} {
  func.func @_pos_emb_kernel(%arg0: i32, %arg1: i32, %arg2: memref<1x16x16xbf16, #tpu.memory_space<vmem>>, %arg3: memref<16x16xbf16, #tpu.memory_space<vmem>>, %arg4: memref<16x16xbf16, #tpu.memory_space<vmem>>, %arg5: memref<2x128xf32, #tpu.memory_space<vmem>>, %arg6: memref<1x16x16x128xf32, #tpu.memory_space<vmem>>) attributes {dimension_semantics = [#tpu.dimension_semantics<parallel>, #tpu.dimension_semantics<parallel>], iteration_bounds = array<i64: 2, 1>, scalar_prefetch = 0 : i64, scratch_operands = 0 : i64, tpu.core_type = #tpu.core_type<tc>, window_params = [{transform_indices = @transform_0, window_bounds = array<i64: 1, 16, 16>}, {transform_indices = @transform_1, window_bounds = array<i64: 16, 16>}, {pipeline_mode = #tpu.pipeline_mode<synchronous>, transform_indices = @transform_2, window_bounds = array<i64: 16, 16>}, {pipeline_mode = #tpu.pipeline_mode<synchronous>, transform_indices = @transform_3, window_bounds = array<i64: 2, 128>}, {transform_indices = @transform_4, window_bounds = array<i64: 1, 16, 16, 128>}]} {
    %c0 = arith.constant 0 : index
    %c0_0 = arith.constant 0 : index
    %c0_1 = arith.constant 0 : index
    %0 = vector.load %arg2[%c0, %c0_0, %c0_1] : memref<1x16x16xbf16, #tpu.memory_space<vmem>>, vector<1x16x16xbf16>
    %1 = vector.shape_cast %0 : vector<1x16x16xbf16> to vector<16x16xbf16>
    %cst = arith.constant 1.000000e+00 : bf16
    %2 = vector.broadcast %cst : bf16 to vector<16x16xbf16>
    %3 = arith.subf %2, %1 : vector<16x16xbf16>
    %c0_2 = arith.constant 0 : index
    %c0_3 = arith.constant 0 : index
    %4 = vector.load %arg3[%c0_2, %c0_3] : memref<16x16xbf16, #tpu.memory_space<vmem>>, vector<16x16xbf16>
    %cst_4 = arith.constant dense<0.000000e+00> : vector<16x16xf32>
    %5 = tpu.matmul %4, %3, %cst_4 {dimension_numbers = #tpu.dot_dimension_numbers<[1], [0], [0], [1], [0, 0, 1, 1], [], []>} : vector<16x16xbf16>, vector<16x16xbf16>, vector<16x16xf32> -> vector<16x16xf32>
    %c0_5 = arith.constant 0 : index
    %c0_6 = arith.constant 0 : index
    %6 = vector.load %arg4[%c0_5, %c0_6] : memref<16x16xbf16, #tpu.memory_space<vmem>>, vector<16x16xbf16>
    %cst_7 = arith.constant dense<0.000000e+00> : vector<16x16xf32>
    %7 = tpu.matmul %3, %6, %cst_7 {dimension_numbers = #tpu.dot_dimension_numbers<[1], [0], [0], [1], [0, 0, 1, 1], [], []>} : vector<16x16xbf16>, vector<16x16xbf16>, vector<16x16xf32> -> vector<16x16xf32>
    %8 = tpu.iota {dimensions = array<i32: 2>} : vector<1x1x128xi32>
    %c64_i32 = arith.constant 64 : i32
    %9 = vector.broadcast %c64_i32 : i32 to vector<1x1x128xi32>
    %10 = arith.cmpi slt, %8, %9 : vector<1x1x128xi32>
    %c0_8 = arith.constant 0 : index
    %c0_9 = arith.constant 0 : index
    %11 = vector.load %arg5[%c0_8, %c0_9] : memref<2x128xf32, #tpu.memory_space<vmem>>, vector<1x128xf32>
    %c1 = arith.constant 1 : index
    %c0_10 = arith.constant 0 : index
    %12 = vector.load %arg5[%c1, %c0_10] : memref<2x128xf32, #tpu.memory_space<vmem>>, vector<1x128xf32>
    %13 = vector.shape_cast %5 : vector<16x16xf32> to vector<16x16x1xf32>
    %14 = vector.shape_cast %7 : vector<16x16xf32> to vector<16x16x1xf32>
    %15 = vector.shape_cast %10 : vector<1x1x128xi1> to vector<1x1x128xi1>
    %16 = vector.broadcast %15 : vector<1x1x128xi1> to vector<16x16x128xi1>
    %17 = vector.shape_cast %13 : vector<16x16x1xf32> to vector<16x16x1xf32>
    %18 = vector.broadcast %17 : vector<16x16x1xf32> to vector<16x16x128xf32>
    %19 = vector.shape_cast %14 : vector<16x16x1xf32> to vector<16x16x1xf32>
    %20 = vector.broadcast %19 : vector<16x16x1xf32> to vector<16x16x128xf32>
    %21 = arith.select %16, %18, %20 : vector<16x16x128xi1>, vector<16x16x128xf32>
    %22 = vector.shape_cast %11 : vector<1x128xf32> to vector<1x1x128xf32>
    %23 = vector.broadcast %22 : vector<1x1x128xf32> to vector<16x16x128xf32>
    %24 = arith.mulf %21, %23 : vector<16x16x128xf32>
    %25 = vector.shape_cast %12 : vector<1x128xf32> to vector<1x1x128xf32>
    %26 = vector.broadcast %25 : vector<1x1x128xf32> to vector<16x16x128xf32>
    %27 = arith.addf %24, %26 : vector<16x16x128xf32>
    %cst_11 = arith.constant 0.159154937 : f32
    %28 = vector.broadcast %cst_11 : f32 to vector<16x16x128xf32>
    %29 = arith.mulf %27, %28 : vector<16x16x128xf32>
    %cst_12 = arith.constant 5.000000e-01 : f32
    %30 = vector.broadcast %cst_12 : f32 to vector<16x16x128xf32>
    %31 = arith.addf %29, %30 : vector<16x16x128xf32>
    %32 = math.floor %31 : vector<16x16x128xf32>
    %cst_13 = arith.constant 6.281250e+00 : f32
    %33 = vector.broadcast %cst_13 : f32 to vector<16x16x128xf32>
    %34 = arith.mulf %32, %33 : vector<16x16x128xf32>
    %35 = arith.subf %27, %34 : vector<16x16x128xf32>
    %cst_14 = arith.constant 0.00193530717 : f32
    %36 = vector.broadcast %cst_14 : f32 to vector<16x16x128xf32>
    %37 = arith.mulf %32, %36 : vector<16x16x128xf32>
    %38 = arith.subf %35, %37 : vector<16x16x128xf32>
    %cst_15 = arith.constant 0.000000e+00 : f32
    %39 = vector.broadcast %cst_15 : f32 to vector<16x16x128xf32>
    %40 = arith.cmpf oge, %38, %39 : vector<16x16x128xf32>
    %cst_16 = arith.constant 3.14159274 : f32
    %cst_17 = arith.constant -3.14159274 : f32
    %41 = vector.broadcast %cst_16 : f32 to vector<16x16x128xf32>
    %42 = vector.broadcast %cst_17 : f32 to vector<16x16x128xf32>
    %43 = arith.select %40, %41, %42 : vector<16x16x128xi1>, vector<16x16x128xf32>
    %44 = math.absf %38 : vector<16x16x128xf32>
    %cst_18 = arith.constant 1.57079637 : f32
    %45 = vector.broadcast %cst_18 : f32 to vector<16x16x128xf32>
    %46 = arith.cmpf ogt, %44, %45 : vector<16x16x128xf32>
    %47 = arith.subf %43, %38 : vector<16x16x128xf32>
    %48 = arith.select %46, %47, %38 : vector<16x16x128xi1>, vector<16x16x128xf32>
    %49 = arith.mulf %48, %48 : vector<16x16x128xf32>
    %cst_19 = arith.constant -2.50521079E-8 : f32
    %50 = vector.broadcast %cst_19 : f32 to vector<16x16x128xf32>
    %51 = arith.mulf %50, %49 : vector<16x16x128xf32>
    %cst_20 = arith.constant 2.75573188E-6 : f32
    %52 = vector.broadcast %cst_20 : f32 to vector<16x16x128xf32>
    %53 = arith.addf %51, %52 : vector<16x16x128xf32>
    %54 = arith.mulf %53, %49 : vector<16x16x128xf32>
    %cst_21 = arith.constant 1.98412701E-4 : f32
    %55 = vector.broadcast %cst_21 : f32 to vector<16x16x128xf32>
    %56 = arith.subf %54, %55 : vector<16x16x128xf32>
    %57 = arith.mulf %56, %49 : vector<16x16x128xf32>
    %cst_22 = arith.constant 0.00833333377 : f32
    %58 = vector.broadcast %cst_22 : f32 to vector<16x16x128xf32>
    %59 = arith.addf %57, %58 : vector<16x16x128xf32>
    %60 = arith.mulf %59, %49 : vector<16x16x128xf32>
    %cst_23 = arith.constant 0.166666672 : f32
    %61 = vector.broadcast %cst_23 : f32 to vector<16x16x128xf32>
    %62 = arith.subf %60, %61 : vector<16x16x128xf32>
    %63 = arith.mulf %49, %62 : vector<16x16x128xf32>
    %64 = arith.mulf %48, %63 : vector<16x16x128xf32>
    %65 = arith.addf %48, %64 : vector<16x16x128xf32>
    %c0_24 = arith.constant 0 : index
    %c0_25 = arith.constant 0 : index
    %c0_26 = arith.constant 0 : index
    %c0_27 = arith.constant 0 : index
    %66 = vector.load %arg6[%c0_24, %c0_25, %c0_26, %c0_27] : memref<1x16x16x128xf32, #tpu.memory_space<vmem>>, vector<1x16x16x128xf32>
    %67 = vector.shape_cast %66 : vector<1x16x16x128xf32> to vector<16x16x128xf32>
    %68 = vector.shape_cast %65 : vector<16x16x128xf32> to vector<1x16x16x128xf32>
    tpu.vector_store %arg6[%c0_24, %c0_25, %c0_26, %c0_27], %68 {strides = array<i32>} : memref<1x16x16x128xf32, #tpu.memory_space<vmem>>, vector<1x16x16x128xf32>,
    return
  }
  func.func @transform_0(%arg0: i32, %arg1: i32) -> (i32, i32, i32) {
    %c0_i32 = arith.constant 0 : i32
    %c0_i32_0 = arith.constant 0 : i32
    %c0_i32_1 = arith.constant 0 : i32
    return %arg0, %c0_i32, %c0_i32_0 : i32, i32, i32
  }
  func.func @transform_1(%arg0: i32, %arg1: i32) -> (i32, i32) {
    %c0_i32 = arith.constant 0 : i32
    %c0_i32_0 = arith.constant 0 : i32
    return %arg1, %c0_i32 : i32, i32
  }
  func.func @transform_2(%arg0: i32, %arg1: i32) -> (i32, i32) {
    %c0_i32 = arith.constant 0 : i32
    %c0_i32_0 = arith.constant 0 : i32
    %c0_i32_1 = arith.constant 0 : i32
    return %c0_i32, %c0_i32_0 : i32, i32
  }
  func.func @transform_3(%arg0: i32, %arg1: i32) -> (i32, i32) {
    %c0_i32 = arith.constant 0 : i32
    %c0_i32_0 = arith.constant 0 : i32
    %c0_i32_1 = arith.constant 0 : i32
    return %c0_i32, %c0_i32_0 : i32, i32
  }
  func.func @transform_4(%arg0: i32, %arg1: i32) -> (i32, i32, i32, i32) {
    %c0_i32 = arith.constant 0 : i32
    %c0_i32_0 = arith.constant 0 : i32
    %c0_i32_1 = arith.constant 0 : i32
    return %arg0, %arg1, %c0_i32, %c0_i32_0 : i32, i32, i32, i32
  }
}

</mosaic_0001>

<llo_original>
// kernel: tpu_custom_call.1
$region0: #{tpu_custom_call.1}
  #allocation0 [shape = 'u32[]', space=smem, size = 0x4, offset = 0x4, fixed_abs, tag = 'smem constant byte address 0x4 - core index']
  #allocation1 [shape = 'u32[144,128]{1,0:T(1,128)}', space=vmem, size = 0x12000, scoped, tag = 'internal scratch']
  %s0 = inlined_call_operand.hbm [shape: bf16[2,16,16], index: 0, kind: input, shape index: {}]
  %s1 = inlined_call_operand.hbm [shape: bf16[16,16], index: 1, kind: input, shape index: {}]
  %s2 = inlined_call_operand.hbm [shape: bf16[16,16], index: 2, kind: input, shape index: {}]
  %s3 = inlined_call_operand.vmem [shape: f32[2,128], index: 3, kind: input, shape index: {}]
  %s4 = inlined_call_operand.hbm [shape: f32[2,16,16,128], index: 4, kind: output, shape index: {}]
  %s5 = sld [smem:[#allocation0]]
  $region61: #{tpu_custom_call.1} parent=0
    _
  %s7 = ssub.s32 1, %s5
  %s8 = scalar_select 0, %s7, %s5
  $region1: #{tpu_custom_call.1} parent=0
    #allocation2 [shape = 'u8[8192]{0}', space=vmem, size = 0x2000, scoped, tag = 'input window, operand 0']
    #allocation3 [shape = 's32[2]{0}', space=sflag, size = 0x8, scoped, tag = 'scoped memory for tpu_custom_call.1']
    #allocation4 [shape = 's32[2]{0}', space=sflag, size = 0x8, scoped, tag = 'scoped memory for tpu_custom_call.1']
    #allocation5 [shape = 'u8[4096]{0}', space=vmem, size = 0x1000, scoped, tag = 'input window, operand 1, single buffered']
    #allocation6 [shape = 's32[1]{0}', space=sflag, size = 0x4, scoped, tag = 'scoped memory for tpu_custom_call.1']
    #allocation7 [shape = 'u8[4096]{0}', space=vmem, size = 0x1000, scoped, tag = 'input window, operand 2, single buffered']
    #allocation8 [shape = 'u8[262144]{0}', space=vmem, size = 0x40000, scoped, tag = 'output window, operand 0']
    %9 = vsyncpa [#allocation3], 0
    %s10 = scalar_lea.sflag [#allocation3], 1
    %11 = vsyncpa %s10, 0
    %12 = vsyncpa [#allocation6], 0
    %13 = vsyncpa [#allocation4], 0
    %s14 = scalar_lea.sflag [#allocation4], 1
    %15 = vsyncpa %s14, 0
    loop: start=0, step=1, limit=4
    $region2: #{tpu_custom_call.1} parent=1 // loop_pre_header
      _
    $region3: #{tpu_custom_call.1} parent=1 // loop_header
      %s17 = sphi 0, %s21
      %p18 = scmp.ge.s32.totalorder %s17, 4
      %s24 = sphi 0, %s36
      %s25 = sphi 0, %s32
      %s26 = sphi 0, %s24
      %s27 = sphi 0, %s25
      %s28 = sphi 0, %s26
      %s29 = sphi 0, %s27
      %s39 = sphi 0, %s41
      %s42 = sphi 0, %s39
      %s43 = sphi 0, %s42
      %s59 = sphi 0, %s43
      %s65 = sphi 0, %s67
      %s68 = sphi 0, %s65
      %s69 = sphi 0, %s68
      %s85 = sphi 0, %s69
      %s89 = sphi 0, %s89
      %s91 = sphi 0, %s89
      %s92 = sphi 0, %s91
      %s106 = sphi 0, %s92
      %s110 = sphi 0, %s110
      %s112 = sphi 0, %s110
      %s113 = sphi 0, %s112
      %s127 = sphi 0, %s113
      %s135 = sphi 0, %s137
      %s138 = sphi 0, %s135
      %s139 = sphi 0, %s138
      %s155 = sphi 0, %s139
    $region4: #{tpu_custom_call.1} parent=1 // loop_header_branch
      %20 = sbr.rel (%p18) target = $region8
    $region5: #{tpu_custom_call.1} parent=1 // loop_body
      %s22 = ssub.s32 %s17, 1
      %s23 = ssub.s32 %s17, 2
      %s30 = sadd.s32 1, %s25
      %p31 = scmp.ge.s32.totalorder %s30, 1
      %s32 = scalar_select %p31, 0, %s30
      %s33 = sadd.s32 1, %s24
      %s34 = scalar_select %p31, %s33, %s24
      %p35 = scmp.ge.s32.totalorder %s34, 2
      %s36 = scalar_select %p35, 0, %s34
      %s37 = ssub.s32 %s24, %s36
      %p38 = scmp.eq.s32.totalorder %s37, 0
      %s40 = sadd.s32 %s39, 1
      %s41 = scalar_select %p38, %s39, %s40
      %p44 = pneg %p38
      %p45 = scmp.eq.s32.totalorder %s17, 1
      %p46 = por %p44, %p45
      %p47 = scmp.ne.s32.totalorder %s39, %s42
      %p48 = scmp.eq.s32.totalorder %s17, 0
      %p49 = por %p47, %p48
      %p50 = scmp.ne.s32.totalorder %s39, %s42
      %p51 = scmp.eq.s32.totalorder %s22, 1
      %p52 = por %p50, %p51
      %p53 = scmp.ne.s32.totalorder %s42, %s43
      %p54 = scmp.eq.s32.totalorder %s22, 0
      %p55 = por %p53, %p54
      %p56 = scmp.ne.s32.totalorder %s42, %s43
      %p57 = scmp.eq.s32.totalorder %s23, 1
      %p58 = por %p56, %p57
      %p60 = scmp.ne.s32.totalorder %s43, %s59
      %p61 = scmp.eq.s32.totalorder %s23, 0
      %p62 = por %p60, %p61
      %s63 = ssub.s32 %s25, %s32
      %p64 = scmp.eq.s32.totalorder %s63, 0
      %s66 = sadd.s32 %s65, 1
      %s67 = scalar_select %p64, %s65, %s66
      %p70 = pneg %p64
      %p71 = scmp.eq.s32.totalorder %s17, 1
      %p72 = por %p70, %p71
      %p73 = scmp.ne.s32.totalorder %s65, %s68
      %p74 = scmp.eq.s32.totalorder %s17, 0
      %p75 = por %p73, %p74
      %p76 = scmp.ne.s32.totalorder %s65, %s68
      %p77 = scmp.eq.s32.totalorder %s22, 1
      %p78 = por %p76, %p77
      %p79 = scmp.ne.s32.totalorder %s68, %s69
      %p80 = scmp.eq.s32.totalorder %s22, 0
      %p81 = por %p79, %p80
      %p82 = scmp.ne.s32.totalorder %s68, %s69
      %p83 = scmp.eq.s32.totalorder %s23, 1
      %p84 = por %p82, %p83
      %p86 = scmp.ne.s32.totalorder %s69, %s85
      %p87 = scmp.eq.s32.totalorder %s23, 0
      %p88 = por %p86, %p87
      %s90 = sadd.s32 %s89, 1
      %p93 = scmp.eq.s32.totalorder %s17, 1
      %p94 = scmp.ne.s32.totalorder %s89, %s91
      %p95 = scmp.eq.s32.totalorder %s17, 0
      %p96 = por %p94, %p95
      %p97 = scmp.ne.s32.totalorder %s89, %s91
      %p98 = scmp.eq.s32.totalorder %s22, 1
      %p99 = por %p97, %p98
      %p100 = scmp.ne.s32.totalorder %s91, %s92
      %p101 = scmp.eq.s32.totalorder %s22, 0
      %p102 = por %p100, %p101
      %p103 = scmp.ne.s32.totalorder %s91, %s92
      %p104 = scmp.eq.s32.totalorder %s23, 1
      %p105 = por %p103, %p104
      %p107 = scmp.ne.s32.totalorder %s92, %s106
      %p108 = scmp.eq.s32.totalorder %s23, 0
      %p109 = por %p107, %p108
      %s111 = sadd.s32 %s110, 1
      %p114 = scmp.eq.s32.totalorder %s17, 1
      %p115 = scmp.ne.s32.totalorder %s110, %s112
      %p116 = scmp.eq.s32.totalorder %s17, 0
      %p117 = por %p115, %p116
      %p118 = scmp.ne.s32.totalorder %s110, %s112
      %p119 = scmp.eq.s32.totalorder %s22, 1
      %p120 = por %p118, %p119
      %p121 = scmp.ne.s32.totalorder %s112, %s113
      %p122 = scmp.eq.s32.totalorder %s22, 0
      %p123 = por %p121, %p122
      %p124 = scmp.ne.s32.totalorder %s112, %s113
      %p125 = scmp.eq.s32.totalorder %s23, 1
      %p126 = por %p124, %p125
      %p128 = scmp.ne.s32.totalorder %s113, %s127
      %p129 = scmp.eq.s32.totalorder %s23, 0
      %p130 = por %p128, %p129
      %s131 = ssub.s32 %s24, %s36
      %s132 = ssub.s32 %s25, %s32
      %s133 = sor.u32 %s131, %s132
      %p134 = scmp.eq.s32.totalorder %s133, 0
      %s136 = sadd.s32 %s135, 1
      %s137 = scalar_select %p134, %s135, %s136
      %p140 = pneg %p134
      %p141 = scmp.eq.s32.totalorder %s17, 1
      %p142 = por %p140, %p141
      %p143 = scmp.ne.s32.totalorder %s135, %s138
      %p144 = scmp.eq.s32.totalorder %s17, 0
      %p145 = por %p143, %p144
      %p146 = scmp.ne.s32.totalorder %s135, %s138
      %p147 = scmp.eq.s32.totalorder %s22, 1
      %p148 = por %p146, %p147
      %p149 = scmp.ne.s32.totalorder %s138, %s139
      %p150 = scmp.eq.s32.totalorder %s22, 0
      %p151 = por %p149, %p150
      %p152 = scmp.ne.s32.totalorder %s138, %s139
      %p153 = scmp.eq.s32.totalorder %s23, 1
      %p154 = por %p152, %p153
      %p156 = scmp.ne.s32.totalorder %s139, %s155
      %p157 = scmp.eq.s32.totalorder %s23, 0
      %p158 = por %p156, %p157
      %p159 = scmp.le.s32.totalorder 1, %s17
      %p160 = scmp.lt.s32.totalorder %s17, 3
      %p161 = pnand %p159, %p160
      %p162 = pneg %p161
      // Predicated region
      $region9: #{tpu_custom_call.1} parent=5 // pred_check
        _
      $region10: #{tpu_custom_call.1} parent=5 // pred_check_branch
        %164 = sbr.rel (%p161) target = $region12
      $region11: #{tpu_custom_call.1} parent=5 // pred_region
        %s165 = ssub.s32 %s17, 1
        // Predicated region
        $region13: #{tpu_custom_call.1} parent=11 // pred_check
          %p166 = pneg %p81
        $region14: #{tpu_custom_call.1} parent=11 // pred_check_branch
          %168 = sbr.rel (%p166) target = $region16
        $region15: #{tpu_custom_call.1} parent=11 // pred_region
          %s169 = smul.u32 2, %s27
          %s171 = ssub.s32 128, 128
          %172 = vsyncadd [#allocation6], %s171
          %s173 = smul.addr %s169, 64
          %s174 = scalar_lea.hbm %s1, %s173
          %s175 = sshll.u32 [#allocation5], 4
          %s176 = int_to_ptr.vmem [resolvable:$true] %s175
          %181 = dma.hbm_to_vmem [thread:$0]  %s174, 128, %s176, [#allocation6], 64, 64, 4
        $region16: #{tpu_custom_call.1} parent=11 // pred_fallthru
          _
        // Predicated region
        $region17: #{tpu_custom_call.1} parent=11 // pred_check
          %p182 = pneg %p102
        $region18: #{tpu_custom_call.1} parent=11 // pred_check_branch
          %184 = sbr.rel (%p182) target = $region20
        $region19: #{tpu_custom_call.1} parent=11 // pred_region
          %s186 = ssub.s32 128, 128
          %187 = vsyncadd [#allocation6], %s186
          %s188 = sshll.u32 [#allocation7], 4
          %s189 = int_to_ptr.vmem [resolvable:$true] %s188
          %194 = dma.hbm_to_vmem [thread:$0]  %s2, 128, %s189, [#allocation6], 64, 64, 4
        $region20: #{tpu_custom_call.1} parent=11 // pred_fallthru
          _
        // Predicated region
        $region21: #{tpu_custom_call.1} parent=11 // pred_check
          %p195 = pneg %p123
        $region22: #{tpu_custom_call.1} parent=11 // pred_check_branch
          %197 = sbr.rel (%p195) target = $region24
        $region23: #{tpu_custom_call.1} parent=11 // pred_region
          _
        $region24: #{tpu_custom_call.1} parent=11 // pred_fallthru
          _
      $region12: #{tpu_custom_call.1} parent=5 // pred_fallthru
        _
      %p198 = scmp.lt.s32.totalorder %s17, 2
      // Predicated region
      $region25: #{tpu_custom_call.1} parent=5 // pred_check
        %p199 = pneg %p198
      $region26: #{tpu_custom_call.1} parent=5 // pred_check_branch
        %201 = sbr.rel (%p199) target = $region28
      $region27: #{tpu_custom_call.1} parent=5 // pred_region
        // Predicated region
        $region29: #{tpu_custom_call.1} parent=27 // pred_check
          %p202 = pneg %p49
        $region30: #{tpu_custom_call.1} parent=27 // pred_check_branch
          %204 = sbr.rel (%p202) target = $region32
        $region31: #{tpu_custom_call.1} parent=27 // pred_region
          %s205 = sand.u32 %s39, 1
          %s206 = scalar_lea.sflag [#allocation3], %s205
          %s207 = sand.u32 %s39, 1
          %s208 = smul.addr %s207, 8
          %s209 = scalar_lea.vmem [#allocation2], %s208
          %s211 = ssub.s32 128, 128
          %212 = vsyncadd %s206, %s211
          %s213 = smul.addr %s24, 2
          %s214 = smul.addr %s213, 64
          %s215 = scalar_lea.hbm %s0, %s214
          %s216 = sshll.u32 %s209, 4
          %s217 = int_to_ptr.vmem [resolvable:$true] %s216
          %222 = dma.hbm_to_vmem [thread:$0]  %s215, 128, %s217, %s206, 64, 64, 4
        $region32: #{tpu_custom_call.1} parent=27 // pred_fallthru
          _
      $region28: #{tpu_custom_call.1} parent=5 // pred_fallthru
        _
      %p223 = scmp.le.s32.totalorder 1, %s17
      %p224 = scmp.lt.s32.totalorder %s17, 3
      %p225 = pnand %p223, %p224
      %p226 = pneg %p225
      // Predicated region
      $region33: #{tpu_custom_call.1} parent=5 // pred_check
        _
      $region34: #{tpu_custom_call.1} parent=5 // pred_check_branch
        %228 = sbr.rel (%p225) target = $region36
      $region35: #{tpu_custom_call.1} parent=5 // pred_region
        %s229 = ssub.s32 %s17, 1
        %s230 = sand.u32 %s42, 1
        %s231 = scalar_lea.sflag [#allocation3], %s230
        %s232 = sand.u32 %s42, 1
        %s233 = smul.addr %s232, 8
        %s234 = scalar_lea.vmem [#allocation2], %s233
        // Predicated region
        $region37: #{tpu_custom_call.1} parent=35 // pred_check
          %p235 = pneg %p55
        $region38: #{tpu_custom_call.1} parent=35 // pred_check_branch
          %237 = sbr.rel (%p235) target = $region40
        $region39: #{tpu_custom_call.1} parent=35 // pred_region
          %238 = dma.done %s231, 128
        $region40: #{tpu_custom_call.1} parent=35 // pred_fallthru
          _
        // Predicated region
        $region41: #{tpu_custom_call.1} parent=35 // pred_check
          %p239 = pneg %p81
        $region42: #{tpu_custom_call.1} parent=35 // pred_check_branch
          %241 = sbr.rel (%p239) target = $region44
        $region43: #{tpu_custom_call.1} parent=35 // pred_region
          %242 = dma.done [#allocation6], 128
        $region44: #{tpu_custom_call.1} parent=35 // pred_fallthru
          _
        // Predicated region
        $region45: #{tpu_custom_call.1} parent=35 // pred_check
          %p243 = pneg %p102
        $region46: #{tpu_custom_call.1} parent=35 // pred_check_branch
          %245 = sbr.rel (%p243) target = $region48
        $region47: #{tpu_custom_call.1} parent=35 // pred_region
          %246 = dma.done [#allocation6], 128
        $region48: #{tpu_custom_call.1} parent=35 // pred_fallthru
          _
        %s247 = sand.u32 %s42, 1
        %s248 = scalar_lea.sflag [#allocation3], %s247
        %s249 = sand.u32 %s42, 1
        %s250 = smul.addr %s249, 8
        %s251 = scalar_lea.vmem [#allocation2], %s250
        %p252 = pneg %p55
        %p253 = pneg %p52
        %p254 = pneg %p81
        %p255 = pneg %p78
        %p256 = pneg %p102
        %p257 = pneg %p99
        %p258 = pneg %p123
        %p259 = pneg %p120
        %p260 = pneg %p151
        %p261 = pneg %p148
        %s262 = sand.u32 %s138, 1
        %s263 = scalar_lea.sflag [#allocation4], %s262
        %s264 = sand.u32 %s138, 1
        %s265 = smul.addr %s264, 256
        %s266 = scalar_lea.vmem [#allocation8], %s265
        %s267 = smul.u32 2, %s27
        %s268 = smul.u32 16, %s27
        %v271 = vld [vmem:[%s234] sm:$0xf]
        %v272 = vld [vmem:[%s234 + $0x4] sm:$0xf]
        %v273 = vsub.bf16 1065369472, %v271
        %v274 = vsub.bf16 1065369472, %v272
        %v275 = vld [vmem:[#allocation5] sm:$0xf]
        %v276 = vld [vmem:[#allocation5 + $0x4] sm:$0xf]
        %v279 = vunpack.c.l.b16 %v275
        %v280 = vunpack.c.l.b16 %v276
        %v281 = vpack.c.b16 %v280, %v279
        %v284 = vunpack.c.l.b16 %v273
        %v285 = vunpack.c.l.b16 %v274
        %v286 = vpack.c.b16 %v285, %v284
        %vm288 = vcmask 130048
        %v290 = vsel %vm288, %v281, 0
        %292 = vmatprep.subr.bf16.mxu0 0
        %293 = vmatpush1.bf16.msra.mxu0 %v286
        %294 = vmatprep.subr.bf16.mxu0 0
        %295 = vmatpush1.bf16.msra.mxu0 0
        %296 = vmatprep.subr.bf16.mxu0 0
        %297 = vmatpush1.bf16.msra.mxu0 0
        %298 = vmatprep.subr.bf16.mxu0 0
        %299 = vmatpush1.bf16.msra.mxu0 0
        %300 = vmatprep.subr.bf16.mxu0 0
        %301 = vmatpush1.bf16.msra.mxu0 0
        %302 = vmatprep.subr.bf16.mxu0 0
        %303 = vmatpush1.bf16.msra.mxu0 0
        %304 = vmatprep.subr.bf16.mxu0 0
        %305 = vmatpush1.bf16.msra.mxu0 0
        %306 = vmatprep.subr.bf16.mxu0 0
        %307 = vmatpush1.bf16.msra.mxu0 0
        %308 = vmatprep.subr.bf16.mxu0 0
        %309 = vmatpush1.bf16.msra.mxu0 0
        %310 = vmatprep.subr.bf16.mxu0 0
        %311 = vmatpush1.bf16.msra.mxu0 0
        %312 = vmatprep.subr.bf16.mxu0 0
        %313 = vmatpush1.bf16.msra.mxu0 0
        %314 = vmatprep.subr.bf16.mxu0 0
        %315 = vmatpush1.bf16.msra.mxu0 0
        %316 = vmatprep.subr.bf16.mxu0 0
        %317 = vmatpush1.bf16.msra.mxu0 0
        %318 = vmatprep.subr.bf16.mxu0 0
        %319 = vmatpush1.bf16.msra.mxu0 0
        %320 = vmatprep.subr.bf16.mxu0 0
        %321 = vmatpush1.bf16.msra.mxu0 0
        %322 = vmatprep.subr.bf16.mxu0 0
        %323 = vmatpush1.bf16.msra.mxu0 0
        %324 = vmatprep.mubr.bf16.mxu0 0
        %325 = vmatmul.mubr.bf16.gmra.mrb[0].mxu0 %v290
        %v326 = vpop.f32.mrb[0].mxu0
        %v327 = vadd.f32 0.0, %v326
        %v328 = vpop.f32.mrb[0].mxu0
        %v329 = vpop.f32.mrb[0].mxu0
        %v330 = vadd.f32 0.0, %v329
        %v331 = vpop.f32.mrb[0].mxu0
        %332 = vdwg.mxu0
        %v333 = vld [vmem:[#allocation7] sm:$0xf]
        %v334 = vld [vmem:[#allocation7 + $0x4] sm:$0xf]
        %v337 = vunpack.c.l.b16 %v333
        %v338 = vunpack.c.l.b16 %v334
        %v339 = vpack.c.b16 %v338, %v337
        %v342 = vsel %vm288, %v286, 0
        %344 = vmatprep.subr.bf16.mxu0 0
        %345 = vmatpush1.bf16.msra.mxu0 %v339
        %346 = vmatprep.subr.bf16.mxu0 0
        %347 = vmatpush1.bf16.msra.mxu0 0
        %348 = vmatprep.subr.bf16.mxu0 0
        %349 = vmatpush1.bf16.msra.mxu0 0
        %350 = vmatprep.subr.bf16.mxu0 0
        %351 = vmatpush1.bf16.msra.mxu0 0
        %352 = vmatprep.subr.bf16.mxu0 0
        %353 = vmatpush1.bf16.msra.mxu0 0
        %354 = vmatprep.subr.bf16.mxu0 0
        %355 = vmatpush1.bf16.msra.mxu0 0
        %356 = vmatprep.subr.bf16.mxu0 0
        %357 = vmatpush1.bf16.msra.mxu0 0
        %358 = vmatprep.subr.bf16.mxu0 0
        %359 = vmatpush1.bf16.msra.mxu0 0
        %360 = vmatprep.subr.bf16.mxu0 0
        %361 = vmatpush1.bf16.msra.mxu0 0
        %362 = vmatprep.subr.bf16.mxu0 0
        %363 = vmatpush1.bf16.msra.mxu0 0
        %364 = vmatprep.subr.bf16.mxu0 0
        %365 = vmatpush1.bf16.msra.mxu0 0
        %366 = vmatprep.subr.bf16.mxu0 0
        %367 = vmatpush1.bf16.msra.mxu0 0
        %368 = vmatprep.subr.bf16.mxu0 0
        %369 = vmatpush1.bf16.msra.mxu0 0
        %370 = vmatprep.subr.bf16.mxu0 0
        %371 = vmatpush1.bf16.msra.mxu0 0
        %372 = vmatprep.subr.bf16.mxu0 0
        %373 = vmatpush1.bf16.msra.mxu0 0
        %374 = vmatprep.subr.bf16.mxu0 0
        %375 = vmatpush1.bf16.msra.mxu0 0
        %376 = vmatprep.mubr.bf16.mxu0 0
        %377 = vmatmul.mubr.bf16.gmra.mrb[0].mxu0 %v342
        %v378 = vpop.f32.mrb[0].mxu0
        %v379 = vadd.f32 0.0, %v378
        %v380 = vpop.f32.mrb[0].mxu0
        %v381 = vpop.f32.mrb[0].mxu0
        %v382 = vadd.f32 0.0, %v381
        %v383 = vpop.f32.mrb[0].mxu0
        %384 = vdwg.mxu0
        %v385 = vlaneseq
        %v386 = vand.u32 %v385, 127
        %vm387 = vcmp.lt.s32.totalorder %v386, 64
        %v388 = vld [vmem:[%s3] sm:$0x1]
        %v389 = vld [vmem:[%s3 + $0x1] sm:$0x1]
        %v390 = vlaneseq
        %v391 = vshrl.u32 %v390, 7
        %v392 = vsub.s32 0, %v391
        %v393 = vrot.slane %v327, %v392
        %395 = vbcast.lane.b32.xlu0 %v393, 256
        %v396 = vpop.permute.xlu0 %395
        %s398 = sor.u32 256, 8
        %399 = vbcast.lane.b32.xlu0 %v393, %s398
        %v400 = vpop.permute.xlu0 %399
        %v401 = vlaneseq
        %v402 = vshrl.u32 %v401, 7
        %v403 = vsub.s32 1, %v402
        %v404 = vrot.slane %v327, %v403
        %406 = vbcast.lane.b32.xlu0 %v404, 256
        %v407 = vpop.permute.xlu0 %406
        %s409 = sor.u32 256, 8
        %410 = vbcast.lane.b32.xlu0 %v404, %s409
        %v411 = vpop.permute.xlu0 %410
        %v412 = vlaneseq
        %v413 = vshrl.u32 %v412, 7
        %v414 = vsub.s32 2, %v413
        %v415 = vrot.slane %v327, %v414
        %417 = vbcast.lane.b32.xlu0 %v415, 256
        %v418 = vpop.permute.xlu0 %417
        %s420 = sor.u32 256, 8
        %421 = vbcast.lane.b32.xlu0 %v415, %s420
        %v422 = vpop.permute.xlu0 %421
        %v423 = vlaneseq
        %v424 = vshrl.u32 %v423, 7
        %v425 = vsub.s32 3, %v424
        %v426 = vrot.slane %v327, %v425
        %428 = vbcast.lane.b32.xlu0 %v426, 256
        %v429 = vpop.permute.xlu0 %428
        %s431 = sor.u32 256, 8
        %432 = vbcast.lane.b32.xlu0 %v426, %s431
        %v433 = vpop.permute.xlu0 %432
        %v434 = vlaneseq
        %v435 = vshrl.u32 %v434, 7
        %v436 = vsub.s32 4, %v435
        %v437 = vrot.slane %v327, %v436
        %439 = vbcast.lane.b32.xlu0 %v437, 256
        %v440 = vpop.permute.xlu0 %439
        %s442 = sor.u32 256, 8
        %443 = vbcast.lane.b32.xlu0 %v437, %s442
        %v444 = vpop.permute.xlu0 %443
        %v445 = vlaneseq
        %v446 = vshrl.u32 %v445, 7
        %v447 = vsub.s32 5, %v446
        %v448 = vrot.slane %v327, %v447
        %450 = vbcast.lane.b32.xlu0 %v448, 256
        %v451 = vpop.permute.xlu0 %450
        %s453 = sor.u32 256, 8
        %454 = vbcast.lane.b32.xlu0 %v448, %s453
        %v455 = vpop.permute.xlu0 %454
        %v456 = vlaneseq
        %v457 = vshrl.u32 %v456, 7
        %v458 = vsub.s32 6, %v457
        %v459 = vrot.slane %v327, %v458
        %461 = vbcast.lane.b32.xlu0 %v459, 256
        %v462 = vpop.permute.xlu0 %461
        %s464 = sor.u32 256, 8
        %465 = vbcast.lane.b32.xlu0 %v459, %s464
        %v466 = vpop.permute.xlu0 %465
        %v467 = vlaneseq
        %v468 = vshrl.u32 %v467, 7
        %v469 = vsub.s32 7, %v468
        %v470 = vrot.slane %v327, %v469
        %472 = vbcast.lane.b32.xlu0 %v470, 256
        %v473 = vpop.permute.xlu0 %472
        %s475 = sor.u32 256, 8
        %476 = vbcast.lane.b32.xlu0 %v470, %s475
        %v477 = vpop.permute.xlu0 %476
        %v478 = vlaneseq
        %v479 = vshrl.u32 %v478, 7
        %v480 = vsub.s32 0, %v479
        %v481 = vrot.slane %v330, %v480
        %483 = vbcast.lane.b32.xlu0 %v481, 256
        %v484 = vpop.permute.xlu0 %483
        %s486 = sor.u32 256, 8
        %487 = vbcast.lane.b32.xlu0 %v481, %s486
        %v488 = vpop.permute.xlu0 %487
        %v489 = vlaneseq
        %v490 = vshrl.u32 %v489, 7
        %v491 = vsub.s32 1, %v490
        %v492 = vrot.slane %v330, %v491
        %494 = vbcast.lane.b32.xlu0 %v492, 256
        %v495 = vpop.permute.xlu0 %494
        %s497 = sor.u32 256, 8
        %498 = vbcast.lane.b32.xlu0 %v492, %s497
        %v499 = vpop.permute.xlu0 %498
        %v500 = vlaneseq
        %v501 = vshrl.u32 %v500, 7
        %v502 = vsub.s32 2, %v501
        %v503 = vrot.slane %v330, %v502
        %505 = vbcast.lane.b32.xlu0 %v503, 256
        %v506 = vpop.permute.xlu0 %505
        %s508 = sor.u32 256, 8
        %509 = vbcast.lane.b32.xlu0 %v503, %s508
        %v510 = vpop.permute.xlu0 %509
        %v511 = vlaneseq
        %v512 = vshrl.u32 %v511, 7
        %v513 = vsub.s32 3, %v512
        %v514 = vrot.slane %v330, %v513
        %516 = vbcast.lane.b32.xlu0 %v514, 256
        %v517 = vpop.permute.xlu0 %516
        %s519 = sor.u32 256, 8
        %520 = vbcast.lane.b32.xlu0 %v514, %s519
        %v521 = vpop.permute.xlu0 %520
        %v522 = vlaneseq
        %v523 = vshrl.u32 %v522, 7
        %v524 = vsub.s32 4, %v523
        %v525 = vrot.slane %v330, %v524
        %527 = vbcast.lane.b32.xlu0 %v525, 256
        %v528 = vpop.permute.xlu0 %527
        %s530 = sor.u32 256, 8
        %531 = vbcast.lane.b32.xlu0 %v525, %s530
        %v532 = vpop.permute.xlu0 %531
        %v533 = vlaneseq
        %v534 = vshrl.u32 %v533, 7
        %v535 = vsub.s32 5, %v534
        %v536 = vrot.slane %v330, %v535
        %538 = vbcast.lane.b32.xlu0 %v536, 256
        %v539 = vpop.permute.xlu0 %538
        %s541 = sor.u32 256, 8
        %542 = vbcast.lane.b32.xlu0 %v536, %s541
        %v543 = vpop.permute.xlu0 %542
        %v544 = vlaneseq
        %v545 = vshrl.u32 %v544, 7
        %v546 = vsub.s32 6, %v545
        %v547 = vrot.slane %v330, %v546
        %549 = vbcast.lane.b32.xlu0 %v547, 256
        %v550 = vpop.permute.xlu0 %549
        %s552 = sor.u32 256, 8
        %553 = vbcast.lane.b32.xlu0 %v547, %s552
        %v554 = vpop.permute.xlu0 %553
        %v555 = vlaneseq
        %v556 = vshrl.u32 %v555, 7
        %v557 = vsub.s32 7, %v556
        %v558 = vrot.slane %v330, %v557
        %560 = vbcast.lane.b32.xlu0 %v558, 256
        %v561 = vpop.permute.xlu0 %560
        %s563 = sor.u32 256, 8
        %564 = vbcast.lane.b32.xlu0 %v558, %s563
        %v565 = vpop.permute.xlu0 %564
        %v566 = vlaneseq
        %v567 = vshrl.u32 %v566, 7
        %v568 = vsub.s32 0, %v567
        %v569 = vrot.slane %v379, %v568
        %571 = vbcast.lane.b32.xlu0 %v569, 256
        %v572 = vpop.permute.xlu0 %571
        %s574 = sor.u32 256, 8
        %575 = vbcast.lane.b32.xlu0 %v569, %s574
        %v576 = vpop.permute.xlu0 %575
        %v577 = vlaneseq
        %v578 = vshrl.u32 %v577, 7
        %v579 = vsub.s32 1, %v578
        %v580 = vrot.slane %v379, %v579
        %582 = vbcast.lane.b32.xlu0 %v580, 256
        %v583 = vpop.permute.xlu0 %582
        %s585 = sor.u32 256, 8
        %586 = vbcast.lane.b32.xlu0 %v580, %s585
        %v587 = vpop.permute.xlu0 %586
        %v588 = vlaneseq
        %v589 = vshrl.u32 %v588, 7
        %v590 = vsub.s32 2, %v589
        %v591 = vrot.slane %v379, %v590
        %593 = vbcast.lane.b32.xlu0 %v591, 256
        %v594 = vpop.permute.xlu0 %593
        %s596 = sor.u32 256, 8
        %597 = vbcast.lane.b32.xlu0 %v591, %s596
        %v598 = vpop.permute.xlu0 %597
        %v599 = vlaneseq
        %v600 = vshrl.u32 %v599, 7
        %v601 = vsub.s32 3, %v600
        %v602 = vrot.slane %v379, %v601
        %604 = vbcast.lane.b32.xlu0 %v602, 256
        %v605 = vpop.permute.xlu0 %604
        %s607 = sor.u32 256, 8
        %608 = vbcast.lane.b32.xlu0 %v602, %s607
        %v609 = vpop.permute.xlu0 %608
        %v610 = vlaneseq
        %v611 = vshrl.u32 %v610, 7
        %v612 = vsub.s32 4, %v611
        %v613 = vrot.slane %v379, %v612
        %615 = vbcast.lane.b32.xlu0 %v613, 256
        %v616 = vpop.permute.xlu0 %615
        %s618 = sor.u32 256, 8
        %619 = vbcast.lane.b32.xlu0 %v613, %s618
        %v620 = vpop.permute.xlu0 %619
        %v621 = vlaneseq
        %v622 = vshrl.u32 %v621, 7
        %v623 = vsub.s32 5, %v622
        %v624 = vrot.slane %v379, %v623
        %626 = vbcast.lane.b32.xlu0 %v624, 256
        %v627 = vpop.permute.xlu0 %626
        %s629 = sor.u32 256, 8
        %630 = vbcast.lane.b32.xlu0 %v624, %s629
        %v631 = vpop.permute.xlu0 %630
        %v632 = vlaneseq
        %v633 = vshrl.u32 %v632, 7
        %v634 = vsub.s32 6, %v633
        %v635 = vrot.slane %v379, %v634
        %637 = vbcast.lane.b32.xlu0 %v635, 256
        %v638 = vpop.permute.xlu0 %637
        %s640 = sor.u32 256, 8
        %641 = vbcast.lane.b32.xlu0 %v635, %s640
        %v642 = vpop.permute.xlu0 %641
        %v643 = vlaneseq
        %v644 = vshrl.u32 %v643, 7
        %v645 = vsub.s32 7, %v644
        %v646 = vrot.slane %v379, %v645
        %648 = vbcast.lane.b32.xlu0 %v646, 256
        %v649 = vpop.permute.xlu0 %648
        %s651 = sor.u32 256, 8
        %652 = vbcast.lane.b32.xlu0 %v646, %s651
        %v653 = vpop.permute.xlu0 %652
        %v654 = vlaneseq
        %v655 = vshrl.u32 %v654, 7
        %v656 = vsub.s32 0, %v655
        %v657 = vrot.slane %v382, %v656
        %659 = vbcast.lane.b32.xlu0 %v657, 256
        %v660 = vpop.permute.xlu0 %659
        %s662 = sor.u32 256, 8
        %663 = vbcast.lane.b32.xlu0 %v657, %s662
        %v664 = vpop.permute.xlu0 %663
        %v665 = vlaneseq
        %v666 = vshrl.u32 %v665, 7
        %v667 = vsub.s32 1, %v666
        %v668 = vrot.slane %v382, %v667
        %670 = vbcast.lane.b32.xlu0 %v668, 256
        %v671 = vpop.permute.xlu0 %670
        %s673 = sor.u32 256, 8
        %674 = vbcast.lane.b32.xlu0 %v668, %s673
        %v675 = vpop.permute.xlu0 %674
        %v676 = vlaneseq
        %v677 = vshrl.u32 %v676, 7
        %v678 = vsub.s32 2, %v677
        %v679 = vrot.slane %v382, %v678
        %681 = vbcast.lane.b32.xlu0 %v679, 256
        %v682 = vpop.permute.xlu0 %681
        %s684 = sor.u32 256, 8
        %685 = vbcast.lane.b32.xlu0 %v679, %s684
        %v686 = vpop.permute.xlu0 %685
        %v687 = vlaneseq
        %v688 = vshrl.u32 %v687, 7
        %v689 = vsub.s32 3, %v688
        %v690 = vrot.slane %v382, %v689
        %692 = vbcast.lane.b32.xlu0 %v690, 256
        %v693 = vpop.permute.xlu0 %692
        %s695 = sor.u32 256, 8
        %696 = vbcast.lane.b32.xlu0 %v690, %s695
        %v697 = vpop.permute.xlu0 %696
        %v698 = vlaneseq
        %v699 = vshrl.u32 %v698, 7
        %v700 = vsub.s32 4, %v699
        %v701 = vrot.slane %v382, %v700
        %703 = vbcast.lane.b32.xlu0 %v701, 256
        %v704 = vpop.permute.xlu0 %703
        %s706 = sor.u32 256, 8
        %707 = vbcast.lane.b32.xlu0 %v701, %s706
        %v708 = vpop.permute.xlu0 %707
        %v709 = vlaneseq
        %v710 = vshrl.u32 %v709, 7
        %v711 = vsub.s32 5, %v710
        %v712 = vrot.slane %v382, %v711
        %714 = vbcast.lane.b32.xlu0 %v712, 256
        %v715 = vpop.permute.xlu0 %714
        %s717 = sor.u32 256, 8
        %718 = vbcast.lane.b32.xlu0 %v712, %s717
        %v719 = vpop.permute.xlu0 %718
        %v720 = vlaneseq
        %v721 = vshrl.u32 %v720, 7
        %v722 = vsub.s32 6, %v721
        %v723 = vrot.slane %v382, %v722
        %725 = vbcast.lane.b32.xlu0 %v723, 256
        %v726 = vpop.permute.xlu0 %725
        %s728 = sor.u32 256, 8
        %729 = vbcast.lane.b32.xlu0 %v723, %s728
        %v730 = vpop.permute.xlu0 %729
        %v731 = vlaneseq
        %v732 = vshrl.u32 %v731, 7
        %v733 = vsub.s32 7, %v732
        %v734 = vrot.slane %v382, %v733
        %736 = vbcast.lane.b32.xlu0 %v734, 256
        %v737 = vpop.permute.xlu0 %736
        %s739 = sor.u32 256, 8
        %740 = vbcast.lane.b32.xlu0 %v734, %s739
        %v741 = vpop.permute.xlu0 %740
        %v742 = vsel %vm387, 1, 0
        %vm743 = vcmp.eq.s32.totalorder %v742, 1
        %v744 = vsel %vm743, %v396, %v572
        %v745 = vsel %vm743, %v400, %v576
        %v746 = vsel %vm743, %v407, %v583
        %v747 = vsel %vm743, %v411, %v587
        %v748 = vsel %vm743, %v418, %v594
        %v749 = vsel %vm743, %v422, %v598
        %v750 = vsel %vm743, %v429, %v605
        %v751 = vsel %vm743, %v433, %v609
        %v752 = vsel %vm743, %v440, %v616
        %v753 = vsel %vm743, %v444, %v620
        %v754 = vsel %vm743, %v451, %v627
        %v755 = vsel %vm743, %v455, %v631
        %v756 = vsel %vm743, %v462, %v638
        %v757 = vsel %vm743, %v466, %v642
        %v758 = vsel %vm743, %v473, %v649
        %v759 = vsel %vm743, %v477, %v653
        %v760 = vsel %vm743, %v484, %v660
        %v761 = vsel %vm743, %v488, %v664
        %v762 = vsel %vm743, %v495, %v671
        %v763 = vsel %vm743, %v499, %v675
        %v764 = vsel %vm743, %v506, %v682
        %v765 = vsel %vm743, %v510, %v686
        %v766 = vsel %vm743, %v517, %v693
        %v767 = vsel %vm743, %v521, %v697
        %v768 = vsel %vm743, %v528, %v704
        %v769 = vsel %vm743, %v532, %v708
        %v770 = vsel %vm743, %v539, %v715
        %v771 = vsel %vm743, %v543, %v719
        %v772 = vsel %vm743, %v550, %v726
        %v773 = vsel %vm743, %v554, %v730
        %v774 = vsel %vm743, %v561, %v737
        %v775 = vsel %vm743, %v565, %v741
        %v776 = vlaneseq
        %v777 = vshrl.u32 %v776, 7
        %v778 = vsub.s32 0, %v777
        %v779 = vrot.slane %v388, %v778
        %v780 = vmul.f32 %v744, %v779
        %v781 = vmul.f32 %v745, %v779
        %v782 = vmul.f32 %v746, %v779
        %v783 = vmul.f32 %v747, %v779
        %v784 = vmul.f32 %v748, %v779
        %v785 = vmul.f32 %v749, %v779
        %v786 = vmul.f32 %v750, %v779
        %v787 = vmul.f32 %v751, %v779
        %v788 = vmul.f32 %v752, %v779
        %v789 = vmul.f32 %v753, %v779
        %v790 = vmul.f32 %v754, %v779
        %v791 = vmul.f32 %v755, %v779
        %v792 = vmul.f32 %v756, %v779
        %v793 = vmul.f32 %v757, %v779
        %v794 = vmul.f32 %v758, %v779
        %v795 = vmul.f32 %v759, %v779
        %v796 = vmul.f32 %v760, %v779
        %v797 = vmul.f32 %v761, %v779
        %v798 = vmul.f32 %v762, %v779
        %v799 = vmul.f32 %v763, %v779
        %v800 = vmul.f32 %v764, %v779
        %v801 = vmul.f32 %v765, %v779
        %v802 = vmul.f32 %v766, %v779
        %v803 = vmul.f32 %v767, %v779
        %v804 = vmul.f32 %v768, %v779
        %v805 = vmul.f32 %v769, %v779
        %v806 = vmul.f32 %v770, %v779
        %v807 = vmul.f32 %v771, %v779
        %v808 = vmul.f32 %v772, %v779
        %v809 = vmul.f32 %v773, %v779
        %v810 = vmul.f32 %v774, %v779
        %v811 = vmul.f32 %v775, %v779
        %v812 = vlaneseq
        %v813 = vshrl.u32 %v812, 7
        %v814 = vsub.s32 0, %v813
        %v815 = vrot.slane %v389, %v814
        %v816 = vadd.f32 %v780, %v815
        %v817 = vadd.f32 %v781, %v815
        %v818 = vadd.f32 %v782, %v815
        %v819 = vadd.f32 %v783, %v815
        %v820 = vadd.f32 %v784, %v815
        %v821 = vadd.f32 %v785, %v815
        %v822 = vadd.f32 %v786, %v815
        %v823 = vadd.f32 %v787, %v815
        %v824 = vadd.f32 %v788, %v815
        %v825 = vadd.f32 %v789, %v815
        %v826 = vadd.f32 %v790, %v815
        %v827 = vadd.f32 %v791, %v815
        %v828 = vadd.f32 %v792, %v815
        %v829 = vadd.f32 %v793, %v815
        %v830 = vadd.f32 %v794, %v815
        %v831 = vadd.f32 %v795, %v815
        %v832 = vadd.f32 %v796, %v815
        %v833 = vadd.f32 %v797, %v815
        %v834 = vadd.f32 %v798, %v815
        %v835 = vadd.f32 %v799, %v815
        %v836 = vadd.f32 %v800, %v815
        %v837 = vadd.f32 %v801, %v815
        %v838 = vadd.f32 %v802, %v815
        %v839 = vadd.f32 %v803, %v815
        %v840 = vadd.f32 %v804, %v815
        %v841 = vadd.f32 %v805, %v815
        %v842 = vadd.f32 %v806, %v815
        %v843 = vadd.f32 %v807, %v815
        %v844 = vadd.f32 %v808, %v815
        %v845 = vadd.f32 %v809, %v815
        %v846 = vadd.f32 %v810, %v815
        %v847 = vadd.f32 %v811, %v815
        %v848 = vmul.f32 %v816, 0.15915494
        %v849 = vmul.f32 %v817, 0.15915494
        %v850 = vmul.f32 %v818, 0.15915494
        %v851 = vmul.f32 %v819, 0.15915494
        %v852 = vmul.f32 %v820, 0.15915494
        %v853 = vmul.f32 %v821, 0.15915494
        %v854 = vmul.f32 %v822, 0.15915494
        %v855 = vmul.f32 %v823, 0.15915494
        %v856 = vmul.f32 %v824, 0.15915494
        %v857 = vmul.f32 %v825, 0.15915494
        %v858 = vmul.f32 %v826, 0.15915494
        %v859 = vmul.f32 %v827, 0.15915494
        %v860 = vmul.f32 %v828, 0.15915494
        %v861 = vmul.f32 %v829, 0.15915494
        %v862 = vmul.f32 %v830, 0.15915494
        %v863 = vmul.f32 %v831, 0.15915494
        %v864 = vmul.f32 %v832, 0.15915494
        %v865 = vmul.f32 %v833, 0.15915494
        %v866 = vmul.f32 %v834, 0.15915494
        %v867 = vmul.f32 %v835, 0.15915494
        %v868 = vmul.f32 %v836, 0.15915494
        %v869 = vmul.f32 %v837, 0.15915494
        %v870 = vmul.f32 %v838, 0.15915494
        %v871 = vmul.f32 %v839, 0.15915494
        %v872 = vmul.f32 %v840, 0.15915494
        %v873 = vmul.f32 %v841, 0.15915494
        %v874 = vmul.f32 %v842, 0.15915494
        %v875 = vmul.f32 %v843, 0.15915494
        %v876 = vmul.f32 %v844, 0.15915494
        %v877 = vmul.f32 %v845, 0.15915494
        %v878 = vmul.f32 %v846, 0.15915494
        %v879 = vmul.f32 %v847, 0.15915494
        %v880 = vadd.f32 %v848, 0.5
        %v881 = vadd.f32 %v849, 0.5
        %v882 = vadd.f32 %v850, 0.5
        %v883 = vadd.f32 %v851, 0.5
        %v884 = vadd.f32 %v852, 0.5
        %v885 = vadd.f32 %v853, 0.5
        %v886 = vadd.f32 %v854, 0.5
        %v887 = vadd.f32 %v855, 0.5
        %v888 = vadd.f32 %v856, 0.5
        %v889 = vadd.f32 %v857, 0.5
        %v890 = vadd.f32 %v858, 0.5
        %v891 = vadd.f32 %v859, 0.5
        %v892 = vadd.f32 %v860, 0.5
        %v893 = vadd.f32 %v861, 0.5
        %v894 = vadd.f32 %v862, 0.5
        %v895 = vadd.f32 %v863, 0.5
        %v896 = vadd.f32 %v864, 0.5
        %v897 = vadd.f32 %v865, 0.5
        %v898 = vadd.f32 %v866, 0.5
        %v899 = vadd.f32 %v867, 0.5
        %v900 = vadd.f32 %v868, 0.5
        %v901 = vadd.f32 %v869, 0.5
        %v902 = vadd.f32 %v870, 0.5
        %v903 = vadd.f32 %v871, 0.5
        %v904 = vadd.f32 %v872, 0.5
        %v905 = vadd.f32 %v873, 0.5
        %v906 = vadd.f32 %v874, 0.5
        %v907 = vadd.f32 %v875, 0.5
        %v908 = vadd.f32 %v876, 0.5
        %v909 = vadd.f32 %v877, 0.5
        %v910 = vadd.f32 %v878, 0.5
        %v911 = vadd.f32 %v879, 0.5
        %v912 = vfloor.f32 %v880
        %v913 = vfloor.f32 %v881
        %v914 = vfloor.f32 %v882
        %v915 = vfloor.f32 %v883
        %v916 = vfloor.f32 %v884
        %v917 = vfloor.f32 %v885
        %v918 = vfloor.f32 %v886
        %v919 = vfloor.f32 %v887
        %v920 = vfloor.f32 %v888
        %v921 = vfloor.f32 %v889
        %v922 = vfloor.f32 %v890
        %v923 = vfloor.f32 %v891
        %v924 = vfloor.f32 %v892
        %v925 = vfloor.f32 %v893
        %v926 = vfloor.f32 %v894
        %v927 = vfloor.f32 %v895
        %v928 = vfloor.f32 %v896
        %v929 = vfloor.f32 %v897
        %v930 = vfloor.f32 %v898
        %v931 = vfloor.f32 %v899
        %v932 = vfloor.f32 %v900
        %v933 = vfloor.f32 %v901
        %v934 = vfloor.f32 %v902
        %v935 = vfloor.f32 %v903
        %v936 = vfloor.f32 %v904
        %v937 = vfloor.f32 %v905
        %v938 = vfloor.f32 %v906
        %v939 = vfloor.f32 %v907
        %v940 = vfloor.f32 %v908
        %v941 = vfloor.f32 %v909
        %v942 = vfloor.f32 %v910
        %v943 = vfloor.f32 %v911
        %v944 = vmul.f32 %v912, 6.28125
        %v945 = vmul.f32 %v913, 6.28125
        %v946 = vmul.f32 %v914, 6.28125
        %v947 = vmul.f32 %v915, 6.28125
        %v948 = vmul.f32 %v916, 6.28125
        %v949 = vmul.f32 %v917, 6.28125
        %v950 = vmul.f32 %v918, 6.28125
        %v951 = vmul.f32 %v919, 6.28125
        %v952 = vmul.f32 %v920, 6.28125
        %v953 = vmul.f32 %v921, 6.28125
        %v954 = vmul.f32 %v922, 6.28125
        %v955 = vmul.f32 %v923, 6.28125
        %v956 = vmul.f32 %v924, 6.28125
        %v957 = vmul.f32 %v925, 6.28125
        %v958 = vmul.f32 %v926, 6.28125
        %v959 = vmul.f32 %v927, 6.28125
        %v960 = vmul.f32 %v928, 6.28125
        %v961 = vmul.f32 %v929, 6.28125
        %v962 = vmul.f32 %v930, 6.28125
        %v963 = vmul.f32 %v931, 6.28125
        %v964 = vmul.f32 %v932, 6.28125
        %v965 = vmul.f32 %v933, 6.28125
        %v966 = vmul.f32 %v934, 6.28125
        %v967 = vmul.f32 %v935, 6.28125
        %v968 = vmul.f32 %v936, 6.28125
        %v969 = vmul.f32 %v937, 6.28125
        %v970 = vmul.f32 %v938, 6.28125
        %v971 = vmul.f32 %v939, 6.28125
        %v972 = vmul.f32 %v940, 6.28125
        %v973 = vmul.f32 %v941, 6.28125
        %v974 = vmul.f32 %v942, 6.28125
        %v975 = vmul.f32 %v943, 6.28125
        %v976 = vsub.f32 %v816, %v944
        %v977 = vsub.f32 %v817, %v945
        %v978 = vsub.f32 %v818, %v946
        %v979 = vsub.f32 %v819, %v947
        %v980 = vsub.f32 %v820, %v948
        %v981 = vsub.f32 %v821, %v949
        %v982 = vsub.f32 %v822, %v950
        %v983 = vsub.f32 %v823, %v951
        %v984 = vsub.f32 %v824, %v952
        %v985 = vsub.f32 %v825, %v953
        %v986 = vsub.f32 %v826, %v954
        %v987 = vsub.f32 %v827, %v955
        %v988 = vsub.f32 %v828, %v956
        %v989 = vsub.f32 %v829, %v957
        %v990 = vsub.f32 %v830, %v958
        %v991 = vsub.f32 %v831, %v959
        %v992 = vsub.f32 %v832, %v960
        %v993 = vsub.f32 %v833, %v961
        %v994 = vsub.f32 %v834, %v962
        %v995 = vsub.f32 %v835, %v963
        %v996 = vsub.f32 %v836, %v964
        %v997 = vsub.f32 %v837, %v965
        %v998 = vsub.f32 %v838, %v966
        %v999 = vsub.f32 %v839, %v967
        %v1000 = vsub.f32 %v840, %v968
        %v1001 = vsub.f32 %v841, %v969
        %v1002 = vsub.f32 %v842, %v970
        %v1003 = vsub.f32 %v843, %v971
        %v1004 = vsub.f32 %v844, %v972
        %v1005 = vsub.f32 %v845, %v973
        %v1006 = vsub.f32 %v846, %v974
        %v1007 = vsub.f32 %v847, %v975
        %v1008 = vmul.f32 %v912, 0.0019353072
        %v1009 = vmul.f32 %v913, 0.0019353072
        %v1010 = vmul.f32 %v914, 0.0019353072
        %v1011 = vmul.f32 %v915, 0.0019353072
        %v1012 = vmul.f32 %v916, 0.0019353072
        %v1013 = vmul.f32 %v917, 0.0019353072
        %v1014 = vmul.f32 %v918, 0.0019353072
        %v1015 = vmul.f32 %v919, 0.0019353072
        %v1016 = vmul.f32 %v920, 0.0019353072
        %v1017 = vmul.f32 %v921, 0.0019353072
        %v1018 = vmul.f32 %v922, 0.0019353072
        %v1019 = vmul.f32 %v923, 0.0019353072
        %v1020 = vmul.f32 %v924, 0.0019353072
        %v1021 = vmul.f32 %v925, 0.0019353072
        %v1022 = vmul.f32 %v926, 0.0019353072
        %v1023 = vmul.f32 %v927, 0.0019353072
        %v1024 = vmul.f32 %v928, 0.0019353072
        %v1025 = vmul.f32 %v929, 0.0019353072
        %v1026 = vmul.f32 %v930, 0.0019353072
        %v1027 = vmul.f32 %v931, 0.0019353072
        %v1028 = vmul.f32 %v932, 0.0019353072
        %v1029 = vmul.f32 %v933, 0.0019353072
        %v1030 = vmul.f32 %v934, 0.0019353072
        %v1031 = vmul.f32 %v935, 0.0019353072
        %v1032 = vmul.f32 %v936, 0.0019353072
        %v1033 = vmul.f32 %v937, 0.0019353072
        %v1034 = vmul.f32 %v938, 0.0019353072
        %v1035 = vmul.f32 %v939, 0.0019353072
        %v1036 = vmul.f32 %v940, 0.0019353072
        %v1037 = vmul.f32 %v941, 0.0019353072
        %v1038 = vmul.f32 %v942, 0.0019353072
        %v1039 = vmul.f32 %v943, 0.0019353072
        %v1040 = vsub.f32 %v976, %v1008
        %v1041 = vsub.f32 %v977, %v1009
        %v1042 = vsub.f32 %v978, %v1010
        %v1043 = vsub.f32 %v979, %v1011
        %v1044 = vsub.f32 %v980, %v1012
        %v1045 = vsub.f32 %v981, %v1013
        %v1046 = vsub.f32 %v982, %v1014
        %v1047 = vsub.f32 %v983, %v1015
        %v1048 = vsub.f32 %v984, %v1016
        %v1049 = vsub.f32 %v985, %v1017
        %v1050 = vsub.f32 %v986, %v1018
        %v1051 = vsub.f32 %v987, %v1019
        %v1052 = vsub.f32 %v988, %v1020
        %v1053 = vsub.f32 %v989, %v1021
        %v1054 = vsub.f32 %v990, %v1022
        %v1055 = vsub.f32 %v991, %v1023
        %v1056 = vsub.f32 %v992, %v1024
        %v1057 = vsub.f32 %v993, %v1025
        %v1058 = vsub.f32 %v994, %v1026
        %v1059 = vsub.f32 %v995, %v1027
        %v1060 = vsub.f32 %v996, %v1028
        %v1061 = vsub.f32 %v997, %v1029
        %v1062 = vsub.f32 %v998, %v1030
        %v1063 = vsub.f32 %v999, %v1031
        %v1064 = vsub.f32 %v1000, %v1032
        %v1065 = vsub.f32 %v1001, %v1033
        %v1066 = vsub.f32 %v1002, %v1034
        %v1067 = vsub.f32 %v1003, %v1035
        %v1068 = vsub.f32 %v1004, %v1036
        %v1069 = vsub.f32 %v1005, %v1037
        %v1070 = vsub.f32 %v1006, %v1038
        %v1071 = vsub.f32 %v1007, %v1039
        %vm1072 = vcmp.ge.f32.partialorder %v1040, 0.0
        %vm1073 = vcmp.ge.f32.partialorder %v1041, 0.0
        %vm1074 = vcmp.ge.f32.partialorder %v1042, 0.0
        %vm1075 = vcmp.ge.f32.partialorder %v1043, 0.0
        %vm1076 = vcmp.ge.f32.partialorder %v1044, 0.0
        %vm1077 = vcmp.ge.f32.partialorder %v1045, 0.0
        %vm1078 = vcmp.ge.f32.partialorder %v1046, 0.0
        %vm1079 = vcmp.ge.f32.partialorder %v1047, 0.0
        %vm1080 = vcmp.ge.f32.partialorder %v1048, 0.0
        %vm1081 = vcmp.ge.f32.partialorder %v1049, 0.0
        %vm1082 = vcmp.ge.f32.partialorder %v1050, 0.0
        %vm1083 = vcmp.ge.f32.partialorder %v1051, 0.0
        %vm1084 = vcmp.ge.f32.partialorder %v1052, 0.0
        %vm1085 = vcmp.ge.f32.partialorder %v1053, 0.0
        %vm1086 = vcmp.ge.f32.partialorder %v1054, 0.0
        %vm1087 = vcmp.ge.f32.partialorder %v1055, 0.0
        %vm1088 = vcmp.ge.f32.partialorder %v1056, 0.0
        %vm1089 = vcmp.ge.f32.partialorder %v1057, 0.0
        %vm1090 = vcmp.ge.f32.partialorder %v1058, 0.0
        %vm1091 = vcmp.ge.f32.partialorder %v1059, 0.0
        %vm1092 = vcmp.ge.f32.partialorder %v1060, 0.0
        %vm1093 = vcmp.ge.f32.partialorder %v1061, 0.0
        %vm1094 = vcmp.ge.f32.partialorder %v1062, 0.0
        %vm1095 = vcmp.ge.f32.partialorder %v1063, 0.0
        %vm1096 = vcmp.ge.f32.partialorder %v1064, 0.0
        %vm1097 = vcmp.ge.f32.partialorder %v1065, 0.0
        %vm1098 = vcmp.ge.f32.partialorder %v1066, 0.0
        %vm1099 = vcmp.ge.f32.partialorder %v1067, 0.0
        %vm1100 = vcmp.ge.f32.partialorder %v1068, 0.0
        %vm1101 = vcmp.ge.f32.partialorder %v1069, 0.0
        %vm1102 = vcmp.ge.f32.partialorder %v1070, 0.0
        %vm1103 = vcmp.ge.f32.partialorder %v1071, 0.0
        %v1104 = vsel %vm1072, 3.1415927, -3.1415927
        %v1105 = vsel %vm1073, 3.1415927, -3.1415927
        %v1106 = vsel %vm1074, 3.1415927, -3.1415927
        %v1107 = vsel %vm1075, 3.1415927, -3.1415927
        %v1108 = vsel %vm1076, 3.1415927, -3.1415927
        %v1109 = vsel %vm1077, 3.1415927, -3.1415927
        %v1110 = vsel %vm1078, 3.1415927, -3.1415927
        %v1111 = vsel %vm1079, 3.1415927, -3.1415927
        %v1112 = vsel %vm1080, 3.1415927, -3.1415927
        %v1113 = vsel %vm1081, 3.1415927, -3.1415927
        %v1114 = vsel %vm1082, 3.1415927, -3.1415927
        %v1115 = vsel %vm1083, 3.1415927, -3.1415927
        %v1116 = vsel %vm1084, 3.1415927, -3.1415927
        %v1117 = vsel %vm1085, 3.1415927, -3.1415927
        %v1118 = vsel %vm1086, 3.1415927, -3.1415927
        %v1119 = vsel %vm1087, 3.1415927, -3.1415927
        %v1120 = vsel %vm1088, 3.1415927, -3.1415927
        %v1121 = vsel %vm1089, 3.1415927, -3.1415927
        %v1122 = vsel %vm1090, 3.1415927, -3.1415927
        %v1123 = vsel %vm1091, 3.1415927, -3.1415927
        %v1124 = vsel %vm1092, 3.1415927, -3.1415927
        %v1125 = vsel %vm1093, 3.1415927, -3.1415927
        %v1126 = vsel %vm1094, 3.1415927, -3.1415927
        %v1127 = vsel %vm1095, 3.1415927, -3.1415927
        %v1128 = vsel %vm1096, 3.1415927, -3.1415927
        %v1129 = vsel %vm1097, 3.1415927, -3.1415927
        %v1130 = vsel %vm1098, 3.1415927, -3.1415927
        %v1131 = vsel %vm1099, 3.1415927, -3.1415927
        %v1132 = vsel %vm1100, 3.1415927, -3.1415927
        %v1133 = vsel %vm1101, 3.1415927, -3.1415927
        %v1134 = vsel %vm1102, 3.1415927, -3.1415927
        %v1135 = vsel %vm1103, 3.1415927, -3.1415927
        %v1136 = vand.u32 2147483647, %v1040
        %v1137 = vand.u32 2147483647, %v1041
        %v1138 = vand.u32 2147483647, %v1042
        %v1139 = vand.u32 2147483647, %v1043
        %v1140 = vand.u32 2147483647, %v1044
        %v1141 = vand.u32 2147483647, %v1045
        %v1142 = vand.u32 2147483647, %v1046
        %v1143 = vand.u32 2147483647, %v1047
        %v1144 = vand.u32 2147483647, %v1048
        %v1145 = vand.u32 2147483647, %v1049
        %v1146 = vand.u32 2147483647, %v1050
        %v1147 = vand.u32 2147483647, %v1051
        %v1148 = vand.u32 2147483647, %v1052
        %v1149 = vand.u32 2147483647, %v1053
        %v1150 = vand.u32 2147483647, %v1054
        %v1151 = vand.u32 2147483647, %v1055
        %v1152 = vand.u32 2147483647, %v1056
        %v1153 = vand.u32 2147483647, %v1057
        %v1154 = vand.u32 2147483647, %v1058
        %v1155 = vand.u32 2147483647, %v1059
        %v1156 = vand.u32 2147483647, %v1060
        %v1157 = vand.u32 2147483647, %v1061
        %v1158 = vand.u32 2147483647, %v1062
        %v1159 = vand.u32 2147483647, %v1063
        %v1160 = vand.u32 2147483647, %v1064
        %v1161 = vand.u32 2147483647, %v1065
        %v1162 = vand.u32 2147483647, %v1066
        %v1163 = vand.u32 2147483647, %v1067
        %v1164 = vand.u32 2147483647, %v1068
        %v1165 = vand.u32 2147483647, %v1069
        %v1166 = vand.u32 2147483647, %v1070
        %v1167 = vand.u32 2147483647, %v1071
        %vm1168 = vcmp.gt.f32.partialorder %v1136, 1.5707964
        %vm1169 = vcmp.gt.f32.partialorder %v1137, 1.5707964
        %vm1170 = vcmp.gt.f32.partialorder %v1138, 1.5707964
        %vm1171 = vcmp.gt.f32.partialorder %v1139, 1.5707964
        %vm1172 = vcmp.gt.f32.partialorder %v1140, 1.5707964
        %vm1173 = vcmp.gt.f32.partialorder %v1141, 1.5707964
        %vm1174 = vcmp.gt.f32.partialorder %v1142, 1.5707964
        %vm1175 = vcmp.gt.f32.partialorder %v1143, 1.5707964
        %vm1176 = vcmp.gt.f32.partialorder %v1144, 1.5707964
        %vm1177 = vcmp.gt.f32.partialorder %v1145, 1.5707964
        %vm1178 = vcmp.gt.f32.partialorder %v1146, 1.5707964
        %vm1179 = vcmp.gt.f32.partialorder %v1147, 1.5707964
        %vm1180 = vcmp.gt.f32.partialorder %v1148, 1.5707964
        %vm1181 = vcmp.gt.f32.partialorder %v1149, 1.5707964
        %vm1182 = vcmp.gt.f32.partialorder %v1150, 1.5707964
        %vm1183 = vcmp.gt.f32.partialorder %v1151, 1.5707964
        %vm1184 = vcmp.gt.f32.partialorder %v1152, 1.5707964
        %vm1185 = vcmp.gt.f32.partialorder %v1153, 1.5707964
        %vm1186 = vcmp.gt.f32.partialorder %v1154, 1.5707964
        %vm1187 = vcmp.gt.f32.partialorder %v1155, 1.5707964
        %vm1188 = vcmp.gt.f32.partialorder %v1156, 1.5707964
        %vm1189 = vcmp.gt.f32.partialorder %v1157, 1.5707964
        %vm1190 = vcmp.gt.f32.partialorder %v1158, 1.5707964
        %vm1191 = vcmp.gt.f32.partialorder %v1159, 1.5707964
        %vm1192 = vcmp.gt.f32.partialorder %v1160, 1.5707964
        %vm1193 = vcmp.gt.f32.partialorder %v1161, 1.5707964
        %vm1194 = vcmp.gt.f32.partialorder %v1162, 1.5707964
        %vm1195 = vcmp.gt.f32.partialorder %v1163, 1.5707964
        %vm1196 = vcmp.gt.f32.partialorder %v1164, 1.5707964
        %vm1197 = vcmp.gt.f32.partialorder %v1165, 1.5707964
        %vm1198 = vcmp.gt.f32.partialorder %v1166, 1.5707964
        %vm1199 = vcmp.gt.f32.partialorder %v1167, 1.5707964
        %v1200 = vsub.f32 %v1104, %v1040
        %v1201 = vsub.f32 %v1105, %v1041
        %v1202 = vsub.f32 %v1106, %v1042
        %v1203 = vsub.f32 %v1107, %v1043
        %v1204 = vsub.f32 %v1108, %v1044
        %v1205 = vsub.f32 %v1109, %v1045
        %v1206 = vsub.f32 %v1110, %v1046
        %v1207 = vsub.f32 %v1111, %v1047
        %v1208 = vsub.f32 %v1112, %v1048
        %v1209 = vsub.f32 %v1113, %v1049
        %v1210 = vsub.f32 %v1114, %v1050
        %v1211 = vsub.f32 %v1115, %v1051
        %v1212 = vsub.f32 %v1116, %v1052
        %v1213 = vsub.f32 %v1117, %v1053
        %v1214 = vsub.f32 %v1118, %v1054
        %v1215 = vsub.f32 %v1119, %v1055
        %v1216 = vsub.f32 %v1120, %v1056
        %v1217 = vsub.f32 %v1121, %v1057
        %v1218 = vsub.f32 %v1122, %v1058
        %v1219 = vsub.f32 %v1123, %v1059
        %v1220 = vsub.f32 %v1124, %v1060
        %v1221 = vsub.f32 %v1125, %v1061
        %v1222 = vsub.f32 %v1126, %v1062
        %v1223 = vsub.f32 %v1127, %v1063
        %v1224 = vsub.f32 %v1128, %v1064
        %v1225 = vsub.f32 %v1129, %v1065
        %v1226 = vsub.f32 %v1130, %v1066
        %v1227 = vsub.f32 %v1131, %v1067
        %v1228 = vsub.f32 %v1132, %v1068
        %v1229 = vsub.f32 %v1133, %v1069
        %v1230 = vsub.f32 %v1134, %v1070
        %v1231 = vsub.f32 %v1135, %v1071
        %v1232 = vsel %vm1168, %v1200, %v1040
        %v1233 = vsel %vm1169, %v1201, %v1041
        %v1234 = vsel %vm1170, %v1202, %v1042
        %v1235 = vsel %vm1171, %v1203, %v1043
        %v1236 = vsel %vm1172, %v1204, %v1044
        %v1237 = vsel %vm1173, %v1205, %v1045
        %v1238 = vsel %vm1174, %v1206, %v1046
        %v1239 = vsel %vm1175, %v1207, %v1047
        %v1240 = vsel %vm1176, %v1208, %v1048
        %v1241 = vsel %vm1177, %v1209, %v1049
        %v1242 = vsel %vm1178, %v1210, %v1050
        %v1243 = vsel %vm1179, %v1211, %v1051
        %v1244 = vsel %vm1180, %v1212, %v1052
        %v1245 = vsel %vm1181, %v1213, %v1053
        %v1246 = vsel %vm1182, %v1214, %v1054
        %v1247 = vsel %vm1183, %v1215, %v1055
        %v1248 = vsel %vm1184, %v1216, %v1056
        %v1249 = vsel %vm1185, %v1217, %v1057
        %v1250 = vsel %vm1186, %v1218, %v1058
        %v1251 = vsel %vm1187, %v1219, %v1059
        %v1252 = vsel %vm1188, %v1220, %v1060
        %v1253 = vsel %vm1189, %v1221, %v1061
        %v1254 = vsel %vm1190, %v1222, %v1062
        %v1255 = vsel %vm1191, %v1223, %v1063
        %v1256 = vsel %vm1192, %v1224, %v1064
        %v1257 = vsel %vm1193, %v1225, %v1065
        %v1258 = vsel %vm1194, %v1226, %v1066
        %v1259 = vsel %vm1195, %v1227, %v1067
        %v1260 = vsel %vm1196, %v1228, %v1068
        %v1261 = vsel %vm1197, %v1229, %v1069
        %v1262 = vsel %vm1198, %v1230, %v1070
        %v1263 = vsel %vm1199, %v1231, %v1071
        %v1264 = vmul.f32 %v1232, %v1232
        %v1265 = vmul.f32 %v1233, %v1233
        %v1266 = vmul.f32 %v1234, %v1234
        %v1267 = vmul.f32 %v1235, %v1235
        %v1268 = vmul.f32 %v1236, %v1236
        %v1269 = vmul.f32 %v1237, %v1237
        %v1270 = vmul.f32 %v1238, %v1238
        %v1271 = vmul.f32 %v1239, %v1239
        %v1272 = vmul.f32 %v1240, %v1240
        %v1273 = vmul.f32 %v1241, %v1241
        %v1274 = vmul.f32 %v1242, %v1242
        %v1275 = vmul.f32 %v1243, %v1243
        %v1276 = vmul.f32 %v1244, %v1244
        %v1277 = vmul.f32 %v1245, %v1245
        %v1278 = vmul.f32 %v1246, %v1246
        %v1279 = vmul.f32 %v1247, %v1247
        %v1280 = vmul.f32 %v1248, %v1248
        %v1281 = vmul.f32 %v1249, %v1249
        %v1282 = vmul.f32 %v1250, %v1250
        %v1283 = vmul.f32 %v1251, %v1251
        %v1284 = vmul.f32 %v1252, %v1252
        %v1285 = vmul.f32 %v1253, %v1253
        %v1286 = vmul.f32 %v1254, %v1254
        %v1287 = vmul.f32 %v1255, %v1255
        %v1288 = vmul.f32 %v1256, %v1256
        %v1289 = vmul.f32 %v1257, %v1257
        %v1290 = vmul.f32 %v1258, %v1258
        %v1291 = vmul.f32 %v1259, %v1259
        %v1292 = vmul.f32 %v1260, %v1260
        %v1293 = vmul.f32 %v1261, %v1261
        %v1294 = vmul.f32 %v1262, %v1262
        %v1295 = vmul.f32 %v1263, %v1263
        %v1296 = vmul.f32 %v1264, -2.5052108e-08
        %v1297 = vmul.f32 %v1265, -2.5052108e-08
        %v1298 = vmul.f32 %v1266, -2.5052108e-08
        %v1299 = vmul.f32 %v1267, -2.5052108e-08
        %v1300 = vmul.f32 %v1268, -2.5052108e-08
        %v1301 = vmul.f32 %v1269, -2.5052108e-08
        %v1302 = vmul.f32 %v1270, -2.5052108e-08
        %v1303 = vmul.f32 %v1271, -2.5052108e-08
        %v1304 = vmul.f32 %v1272, -2.5052108e-08
        %v1305 = vmul.f32 %v1273, -2.5052108e-08
        %v1306 = vmul.f32 %v1274, -2.5052108e-08
        %v1307 = vmul.f32 %v1275, -2.5052108e-08
        %v1308 = vmul.f32 %v1276, -2.5052108e-08
        %v1309 = vmul.f32 %v1277, -2.5052108e-08
        %v1310 = vmul.f32 %v1278, -2.5052108e-08
        %v1311 = vmul.f32 %v1279, -2.5052108e-08
        %v1312 = vmul.f32 %v1280, -2.5052108e-08
        %v1313 = vmul.f32 %v1281, -2.5052108e-08
        %v1314 = vmul.f32 %v1282, -2.5052108e-08
        %v1315 = vmul.f32 %v1283, -2.5052108e-08
        %v1316 = vmul.f32 %v1284, -2.5052108e-08
        %v1317 = vmul.f32 %v1285, -2.5052108e-08
        %v1318 = vmul.f32 %v1286, -2.5052108e-08
        %v1319 = vmul.f32 %v1287, -2.5052108e-08
        %v1320 = vmul.f32 %v1288, -2.5052108e-08
        %v1321 = vmul.f32 %v1289, -2.5052108e-08
        %v1322 = vmul.f32 %v1290, -2.5052108e-08
        %v1323 = vmul.f32 %v1291, -2.5052108e-08
        %v1324 = vmul.f32 %v1292, -2.5052108e-08
        %v1325 = vmul.f32 %v1293, -2.5052108e-08
        %v1326 = vmul.f32 %v1294, -2.5052108e-08
        %v1327 = vmul.f32 %v1295, -2.5052108e-08
        %v1328 = vadd.f32 %v1296, 2.7557319e-06
        %v1329 = vadd.f32 %v1297, 2.7557319e-06
        %v1330 = vadd.f32 %v1298, 2.7557319e-06
        %v1331 = vadd.f32 %v1299, 2.7557319e-06
        %v1332 = vadd.f32 %v1300, 2.7557319e-06
        %v1333 = vadd.f32 %v1301, 2.7557319e-06
        %v1334 = vadd.f32 %v1302, 2.7557319e-06
        %v1335 = vadd.f32 %v1303, 2.7557319e-06
        %v1336 = vadd.f32 %v1304, 2.7557319e-06
        %v1337 = vadd.f32 %v1305, 2.7557319e-06
        %v1338 = vadd.f32 %v1306, 2.7557319e-06
        %v1339 = vadd.f32 %v1307, 2.7557319e-06
        %v1340 = vadd.f32 %v1308, 2.7557319e-06
        %v1341 = vadd.f32 %v1309, 2.7557319e-06
        %v1342 = vadd.f32 %v1310, 2.7557319e-06
        %v1343 = vadd.f32 %v1311, 2.7557319e-06
        %v1344 = vadd.f32 %v1312, 2.7557319e-06
        %v1345 = vadd.f32 %v1313, 2.7557319e-06
        %v1346 = vadd.f32 %v1314, 2.7557319e-06
        %v1347 = vadd.f32 %v1315, 2.7557319e-06
        %v1348 = vadd.f32 %v1316, 2.7557319e-06
        %v1349 = vadd.f32 %v1317, 2.7557319e-06
        %v1350 = vadd.f32 %v1318, 2.7557319e-06
        %v1351 = vadd.f32 %v1319, 2.7557319e-06
        %v1352 = vadd.f32 %v1320, 2.7557319e-06
        %v1353 = vadd.f32 %v1321, 2.7557319e-06
        %v1354 = vadd.f32 %v1322, 2.7557319e-06
        %v1355 = vadd.f32 %v1323, 2.7557319e-06
        %v1356 = vadd.f32 %v1324, 2.7557319e-06
        %v1357 = vadd.f32 %v1325, 2.7557319e-06
        %v1358 = vadd.f32 %v1326, 2.7557319e-06
        %v1359 = vadd.f32 %v1327, 2.7557319e-06
        %v1360 = vmul.f32 %v1328, %v1264
        %v1361 = vmul.f32 %v1329, %v1265
        %v1362 = vmul.f32 %v1330, %v1266
        %v1363 = vmul.f32 %v1331, %v1267
        %v1364 = vmul.f32 %v1332, %v1268
        %v1365 = vmul.f32 %v1333, %v1269
        %v1366 = vmul.f32 %v1334, %v1270
        %v1367 = vmul.f32 %v1335, %v1271
        %v1368 = vmul.f32 %v1336, %v1272
        %v1369 = vmul.f32 %v1337, %v1273
        %v1370 = vmul.f32 %v1338, %v1274
        %v1371 = vmul.f32 %v1339, %v1275
        %v1372 = vmul.f32 %v1340, %v1276
        %v1373 = vmul.f32 %v1341, %v1277
        %v1374 = vmul.f32 %v1342, %v1278
        %v1375 = vmul.f32 %v1343, %v1279
        %v1376 = vmul.f32 %v1344, %v1280
        %v1377 = vmul.f32 %v1345, %v1281
        %v1378 = vmul.f32 %v1346, %v1282
        %v1379 = vmul.f32 %v1347, %v1283
        %v1380 = vmul.f32 %v1348, %v1284
        %v1381 = vmul.f32 %v1349, %v1285
        %v1382 = vmul.f32 %v1350, %v1286
        %v1383 = vmul.f32 %v1351, %v1287
        %v1384 = vmul.f32 %v1352, %v1288
        %v1385 = vmul.f32 %v1353, %v1289
        %v1386 = vmul.f32 %v1354, %v1290
        %v1387 = vmul.f32 %v1355, %v1291
        %v1388 = vmul.f32 %v1356, %v1292
        %v1389 = vmul.f32 %v1357, %v1293
        %v1390 = vmul.f32 %v1358, %v1294
        %v1391 = vmul.f32 %v1359, %v1295
        %v1392 = vsub.f32 %v1360, 0.0001984127
        %v1393 = vsub.f32 %v1361, 0.0001984127
        %v1394 = vsub.f32 %v1362, 0.0001984127
        %v1395 = vsub.f32 %v1363, 0.0001984127
        %v1396 = vsub.f32 %v1364, 0.0001984127
        %v1397 = vsub.f32 %v1365, 0.0001984127
        %v1398 = vsub.f32 %v1366, 0.0001984127
        %v1399 = vsub.f32 %v1367, 0.0001984127
        %v1400 = vsub.f32 %v1368, 0.0001984127
        %v1401 = vsub.f32 %v1369, 0.0001984127
        %v1402 = vsub.f32 %v1370, 0.0001984127
        %v1403 = vsub.f32 %v1371, 0.0001984127
        %v1404 = vsub.f32 %v1372, 0.0001984127
        %v1405 = vsub.f32 %v1373, 0.0001984127
        %v1406 = vsub.f32 %v1374, 0.0001984127
        %v1407 = vsub.f32 %v1375, 0.0001984127
        %v1408 = vsub.f32 %v1376, 0.0001984127
        %v1409 = vsub.f32 %v1377, 0.0001984127
        %v1410 = vsub.f32 %v1378, 0.0001984127
        %v1411 = vsub.f32 %v1379, 0.0001984127
        %v1412 = vsub.f32 %v1380, 0.0001984127
        %v1413 = vsub.f32 %v1381, 0.0001984127
        %v1414 = vsub.f32 %v1382, 0.0001984127
        %v1415 = vsub.f32 %v1383, 0.0001984127
        %v1416 = vsub.f32 %v1384, 0.0001984127
        %v1417 = vsub.f32 %v1385, 0.0001984127
        %v1418 = vsub.f32 %v1386, 0.0001984127
        %v1419 = vsub.f32 %v1387, 0.0001984127
        %v1420 = vsub.f32 %v1388, 0.0001984127
        %v1421 = vsub.f32 %v1389, 0.0001984127
        %v1422 = vsub.f32 %v1390, 0.0001984127
        %v1423 = vsub.f32 %v1391, 0.0001984127
        %v1424 = vmul.f32 %v1392, %v1264
        %v1425 = vmul.f32 %v1393, %v1265
        %v1426 = vmul.f32 %v1394, %v1266
        %v1427 = vmul.f32 %v1395, %v1267
        %v1428 = vmul.f32 %v1396, %v1268
        %v1429 = vmul.f32 %v1397, %v1269
        %v1430 = vmul.f32 %v1398, %v1270
        %v1431 = vmul.f32 %v1399, %v1271
        %v1432 = vmul.f32 %v1400, %v1272
        %v1433 = vmul.f32 %v1401, %v1273
        %v1434 = vmul.f32 %v1402, %v1274
        %v1435 = vmul.f32 %v1403, %v1275
        %v1436 = vmul.f32 %v1404, %v1276
        %v1437 = vmul.f32 %v1405, %v1277
        %v1438 = vmul.f32 %v1406, %v1278
        %v1439 = vmul.f32 %v1407, %v1279
        %v1440 = vmul.f32 %v1408, %v1280
        %v1441 = vmul.f32 %v1409, %v1281
        %v1442 = vmul.f32 %v1410, %v1282
        %v1443 = vmul.f32 %v1411, %v1283
        %v1444 = vmul.f32 %v1412, %v1284
        %v1445 = vmul.f32 %v1413, %v1285
        %v1446 = vmul.f32 %v1414, %v1286
        %v1447 = vmul.f32 %v1415, %v1287
        %v1448 = vmul.f32 %v1416, %v1288
        %v1449 = vmul.f32 %v1417, %v1289
        %v1450 = vmul.f32 %v1418, %v1290
        %v1451 = vmul.f32 %v1419, %v1291
        %v1452 = vmul.f32 %v1420, %v1292
        %v1453 = vmul.f32 %v1421, %v1293
        %v1454 = vmul.f32 %v1422, %v1294
        %v1455 = vmul.f32 %v1423, %v1295
        %v1456 = vadd.f32 %v1424, 0.008333334
        %v1457 = vadd.f32 %v1425, 0.008333334
        %v1458 = vadd.f32 %v1426, 0.008333334
        %v1459 = vadd.f32 %v1427, 0.008333334
        %v1460 = vadd.f32 %v1428, 0.008333334
        %v1461 = vadd.f32 %v1429, 0.008333334
        %v1462 = vadd.f32 %v1430, 0.008333334
        %v1463 = vadd.f32 %v1431, 0.008333334
        %v1464 = vadd.f32 %v1432, 0.008333334
        %v1465 = vadd.f32 %v1433, 0.008333334
        %v1466 = vadd.f32 %v1434, 0.008333334
        %v1467 = vadd.f32 %v1435, 0.008333334
        %v1468 = vadd.f32 %v1436, 0.008333334
        %v1469 = vadd.f32 %v1437, 0.008333334
        %v1470 = vadd.f32 %v1438, 0.008333334
        %v1471 = vadd.f32 %v1439, 0.008333334
        %v1472 = vadd.f32 %v1440, 0.008333334
        %v1473 = vadd.f32 %v1441, 0.008333334
        %v1474 = vadd.f32 %v1442, 0.008333334
        %v1475 = vadd.f32 %v1443, 0.008333334
        %v1476 = vadd.f32 %v1444, 0.008333334
        %v1477 = vadd.f32 %v1445, 0.008333334
        %v1478 = vadd.f32 %v1446, 0.008333334
        %v1479 = vadd.f32 %v1447, 0.008333334
        %v1480 = vadd.f32 %v1448, 0.008333334
        %v1481 = vadd.f32 %v1449, 0.008333334
        %v1482 = vadd.f32 %v1450, 0.008333334
        %v1483 = vadd.f32 %v1451, 0.008333334
        %v1484 = vadd.f32 %v1452, 0.008333334
        %v1485 = vadd.f32 %v1453, 0.008333334
        %v1486 = vadd.f32 %v1454, 0.008333334
        %v1487 = vadd.f32 %v1455, 0.008333334
        %v1488 = vmul.f32 %v1456, %v1264
        %v1489 = vmul.f32 %v1457, %v1265
        %v1490 = vmul.f32 %v1458, %v1266
        %v1491 = vmul.f32 %v1459, %v1267
        %v1492 = vmul.f32 %v1460, %v1268
        %v1493 = vmul.f32 %v1461, %v1269
        %v1494 = vmul.f32 %v1462, %v1270
        %v1495 = vmul.f32 %v1463, %v1271
        %v1496 = vmul.f32 %v1464, %v1272
        %v1497 = vmul.f32 %v1465, %v1273
        %v1498 = vmul.f32 %v1466, %v1274
        %v1499 = vmul.f32 %v1467, %v1275
        %v1500 = vmul.f32 %v1468, %v1276
        %v1501 = vmul.f32 %v1469, %v1277
        %v1502 = vmul.f32 %v1470, %v1278
        %v1503 = vmul.f32 %v1471, %v1279
        %v1504 = vmul.f32 %v1472, %v1280
        %v1505 = vmul.f32 %v1473, %v1281
        %v1506 = vmul.f32 %v1474, %v1282
        %v1507 = vmul.f32 %v1475, %v1283
        %v1508 = vmul.f32 %v1476, %v1284
        %v1509 = vmul.f32 %v1477, %v1285
        %v1510 = vmul.f32 %v1478, %v1286
        %v1511 = vmul.f32 %v1479, %v1287
        %v1512 = vmul.f32 %v1480, %v1288
        %v1513 = vmul.f32 %v1481, %v1289
        %v1514 = vmul.f32 %v1482, %v1290
        %v1515 = vmul.f32 %v1483, %v1291
        %v1516 = vmul.f32 %v1484, %v1292
        %v1517 = vmul.f32 %v1485, %v1293
        %v1518 = vmul.f32 %v1486, %v1294
        %v1519 = vmul.f32 %v1487, %v1295
        %v1520 = vsub.f32 %v1488, 0.16666667
        %v1521 = vsub.f32 %v1489, 0.16666667
        %v1522 = vsub.f32 %v1490, 0.16666667
        %v1523 = vsub.f32 %v1491, 0.16666667
        %v1524 = vsub.f32 %v1492, 0.16666667
        %v1525 = vsub.f32 %v1493, 0.16666667
        %v1526 = vsub.f32 %v1494, 0.16666667
        %v1527 = vsub.f32 %v1495, 0.16666667
        %v1528 = vsub.f32 %v1496, 0.16666667
        %v1529 = vsub.f32 %v1497, 0.16666667
        %v1530 = vsub.f32 %v1498, 0.16666667
        %v1531 = vsub.f32 %v1499, 0.16666667
        %v1532 = vsub.f32 %v1500, 0.16666667
        %v1533 = vsub.f32 %v1501, 0.16666667
        %v1534 = vsub.f32 %v1502, 0.16666667
        %v1535 = vsub.f32 %v1503, 0.16666667
        %v1536 = vsub.f32 %v1504, 0.16666667
        %v1537 = vsub.f32 %v1505, 0.16666667
        %v1538 = vsub.f32 %v1506, 0.16666667
        %v1539 = vsub.f32 %v1507, 0.16666667
        %v1540 = vsub.f32 %v1508, 0.16666667
        %v1541 = vsub.f32 %v1509, 0.16666667
        %v1542 = vsub.f32 %v1510, 0.16666667
        %v1543 = vsub.f32 %v1511, 0.16666667
        %v1544 = vsub.f32 %v1512, 0.16666667
        %v1545 = vsub.f32 %v1513, 0.16666667
        %v1546 = vsub.f32 %v1514, 0.16666667
        %v1547 = vsub.f32 %v1515, 0.16666667
        %v1548 = vsub.f32 %v1516, 0.16666667
        %v1549 = vsub.f32 %v1517, 0.16666667
        %v1550 = vsub.f32 %v1518, 0.16666667
        %v1551 = vsub.f32 %v1519, 0.16666667
        %v1552 = vmul.f32 %v1264, %v1520
        %v1553 = vmul.f32 %v1265, %v1521
        %v1554 = vmul.f32 %v1266, %v1522
        %v1555 = vmul.f32 %v1267, %v1523
        %v1556 = vmul.f32 %v1268, %v1524
        %v1557 = vmul.f32 %v1269, %v1525
        %v1558 = vmul.f32 %v1270, %v1526
        %v1559 = vmul.f32 %v1271, %v1527
        %v1560 = vmul.f32 %v1272, %v1528
        %v1561 = vmul.f32 %v1273, %v1529
        %v1562 = vmul.f32 %v1274, %v1530
        %v1563 = vmul.f32 %v1275, %v1531
        %v1564 = vmul.f32 %v1276, %v1532
        %v1565 = vmul.f32 %v1277, %v1533
        %v1566 = vmul.f32 %v1278, %v1534
        %v1567 = vmul.f32 %v1279, %v1535
        %v1568 = vmul.f32 %v1280, %v1536
        %v1569 = vmul.f32 %v1281, %v1537
        %v1570 = vmul.f32 %v1282, %v1538
        %v1571 = vmul.f32 %v1283, %v1539
        %v1572 = vmul.f32 %v1284, %v1540
        %v1573 = vmul.f32 %v1285, %v1541
        %v1574 = vmul.f32 %v1286, %v1542
        %v1575 = vmul.f32 %v1287, %v1543
        %v1576 = vmul.f32 %v1288, %v1544
        %v1577 = vmul.f32 %v1289, %v1545
        %v1578 = vmul.f32 %v1290, %v1546
        %v1579 = vmul.f32 %v1291, %v1547
        %v1580 = vmul.f32 %v1292, %v1548
        %v1581 = vmul.f32 %v1293, %v1549
        %v1582 = vmul.f32 %v1294, %v1550
        %v1583 = vmul.f32 %v1295, %v1551
        %v1584 = vmul.f32 %v1232, %v1552
        %v1585 = vmul.f32 %v1233, %v1553
        %v1586 = vmul.f32 %v1234, %v1554
        %v1587 = vmul.f32 %v1235, %v1555
        %v1588 = vmul.f32 %v1236, %v1556
        %v1589 = vmul.f32 %v1237, %v1557
        %v1590 = vmul.f32 %v1238, %v1558
        %v1591 = vmul.f32 %v1239, %v1559
        %v1592 = vmul.f32 %v1240, %v1560
        %v1593 = vmul.f32 %v1241, %v1561
        %v1594 = vmul.f32 %v1242, %v1562
        %v1595 = vmul.f32 %v1243, %v1563
        %v1596 = vmul.f32 %v1244, %v1564
        %v1597 = vmul.f32 %v1245, %v1565
        %v1598 = vmul.f32 %v1246, %v1566
        %v1599 = vmul.f32 %v1247, %v1567
        %v1600 = vmul.f32 %v1248, %v1568
        %v1601 = vmul.f32 %v1249, %v1569
        %v1602 = vmul.f32 %v1250, %v1570
        %v1603 = vmul.f32 %v1251, %v1571
        %v1604 = vmul.f32 %v1252, %v1572
        %v1605 = vmul.f32 %v1253, %v1573
        %v1606 = vmul.f32 %v1254, %v1574
        %v1607 = vmul.f32 %v1255, %v1575
        %v1608 = vmul.f32 %v1256, %v1576
        %v1609 = vmul.f32 %v1257, %v1577
        %v1610 = vmul.f32 %v1258, %v1578
        %v1611 = vmul.f32 %v1259, %v1579
        %v1612 = vmul.f32 %v1260, %v1580
        %v1613 = vmul.f32 %v1261, %v1581
        %v1614 = vmul.f32 %v1262, %v1582
        %v1615 = vmul.f32 %v1263, %v1583
        %v1616 = vadd.f32 %v1232, %v1584
        %v1617 = vadd.f32 %v1233, %v1585
        %v1618 = vadd.f32 %v1234, %v1586
        %v1619 = vadd.f32 %v1235, %v1587
        %v1620 = vadd.f32 %v1236, %v1588
        %v1621 = vadd.f32 %v1237, %v1589
        %v1622 = vadd.f32 %v1238, %v1590
        %v1623 = vadd.f32 %v1239, %v1591
        %v1624 = vadd.f32 %v1240, %v1592
        %v1625 = vadd.f32 %v1241, %v1593
        %v1626 = vadd.f32 %v1242, %v1594
        %v1627 = vadd.f32 %v1243, %v1595
        %v1628 = vadd.f32 %v1244, %v1596
        %v1629 = vadd.f32 %v1245, %v1597
        %v1630 = vadd.f32 %v1246, %v1598
        %v1631 = vadd.f32 %v1247, %v1599
        %v1632 = vadd.f32 %v1248, %v1600
        %v1633 = vadd.f32 %v1249, %v1601
        %v1634 = vadd.f32 %v1250, %v1602
        %v1635 = vadd.f32 %v1251, %v1603
        %v1636 = vadd.f32 %v1252, %v1604
        %v1637 = vadd.f32 %v1253, %v1605
        %v1638 = vadd.f32 %v1254, %v1606
        %v1639 = vadd.f32 %v1255, %v1607
        %v1640 = vadd.f32 %v1256, %v1608
        %v1641 = vadd.f32 %v1257, %v1609
        %v1642 = vadd.f32 %v1258, %v1610
        %v1643 = vadd.f32 %v1259, %v1611
        %v1644 = vadd.f32 %v1260, %v1612
        %v1645 = vadd.f32 %v1261, %v1613
        %v1646 = vadd.f32 %v1262, %v1614
        %v1647 = vadd.f32 %v1263, %v1615
        %1648 = vst [vmem:[%s266] sm:$0xff] %v1616
        %1649 = vst [vmem:[%s266 + $0x8] sm:$0xff] %v1617
        %1650 = vst [vmem:[%s266 + $0x10] sm:$0xff] %v1618
        %1651 = vst [vmem:[%s266 + $0x18] sm:$0xff] %v1619
        %1652 = vst [vmem:[%s266 + $0x20] sm:$0xff] %v1620
        %1653 = vst [vmem:[%s266 + $0x28] sm:$0xff] %v1621
        %1654 = vst [vmem:[%s266 + $0x30] sm:$0xff] %v1622
        %1655 = vst [vmem:[%s266 + $0x38] sm:$0xff] %v1623
        %1656 = vst [vmem:[%s266 + $0x40] sm:$0xff] %v1624
        %1657 = vst [vmem:[%s266 + $0x48] sm:$0xff] %v1625
        %1658 = vst [vmem:[%s266 + $0x50] sm:$0xff] %v1626
        %1659 = vst [vmem:[%s266 + $0x58] sm:$0xff] %v1627
        %1660 = vst [vmem:[%s266 + $0x60] sm:$0xff] %v1628
        %1661 = vst [vmem:[%s266 + $0x68] sm:$0xff] %v1629
        %1662 = vst [vmem:[%s266 + $0x70] sm:$0xff] %v1630
        %1663 = vst [vmem:[%s266 + $0x78] sm:$0xff] %v1631
        %1664 = vst [vmem:[%s266 + $0x80] sm:$0xff] %v1632
        %1665 = vst [vmem:[%s266 + $0x88] sm:$0xff] %v1633
        %1666 = vst [vmem:[%s266 + $0x90] sm:$0xff] %v1634
        %1667 = vst [vmem:[%s266 + $0x98] sm:$0xff] %v1635
        %1668 = vst [vmem:[%s266 + $0xa0] sm:$0xff] %v1636
        %1669 = vst [vmem:[%s266 + $0xa8] sm:$0xff] %v1637
        %1670 = vst [vmem:[%s266 + $0xb0] sm:$0xff] %v1638
        %1671 = vst [vmem:[%s266 + $0xb8] sm:$0xff] %v1639
        %1672 = vst [vmem:[%s266 + $0xc0] sm:$0xff] %v1640
        %1673 = vst [vmem:[%s266 + $0xc8] sm:$0xff] %v1641
        %1674 = vst [vmem:[%s266 + $0xd0] sm:$0xff] %v1642
        %1675 = vst [vmem:[%s266 + $0xd8] sm:$0xff] %v1643
        %1676 = vst [vmem:[%s266 + $0xe0] sm:$0xff] %v1644
        %1677 = vst [vmem:[%s266 + $0xe8] sm:$0xff] %v1645
        %1678 = vst [vmem:[%s266 + $0xf0] sm:$0xff] %v1646
        %1679 = vst [vmem:[%s266 + $0xf8] sm:$0xff] %v1647
        %s1680 = sand.u32 %s138, 1
        %s1681 = scalar_lea.sflag [#allocation4], %s1680
        %s1682 = sand.u32 %s138, 1
        %s1683 = smul.addr %s1682, 256
        %s1684 = scalar_lea.vmem [#allocation8], %s1683
        // Predicated region
        $region49: #{tpu_custom_call.1} parent=35 // pred_check
          %p1685 = pneg %p148
        $region50: #{tpu_custom_call.1} parent=35 // pred_check_branch
          %1687 = sbr.rel (%p1685) target = $region52
        $region51: #{tpu_custom_call.1} parent=35 // pred_region
          %s1688 = smul.u32 16, %s27
          %s1690 = ssub.s32 4096, 4096
          %1691 = vsyncadd %s1681, %s1690
          %s1692 = smul.addr %s1688, 2
          %s1693 = smul.addr %s26, 32
          %s1694 = sadd.s32 %s1692, %s1693
          %s1695 = smul.addr %s1694, 128
          %s1696 = scalar_lea.hbm %s4, %s1695
          %s1697 = sshll.u32 %s1684, 4
          %s1698 = int_to_ptr.vmem [resolvable:$true] %s1697
          %1703 = dma.vmem_to_hbm [thread:$0]  %s1698, 4096, %s1696, %s1681, 128, 128, 8
        $region52: #{tpu_custom_call.1} parent=35 // pred_fallthru
          _
      $region36: #{tpu_custom_call.1} parent=5 // pred_fallthru
        _
      %p1704 = scmp.le.s32.totalorder 2, %s17
      // Predicated region
      $region53: #{tpu_custom_call.1} parent=5 // pred_check
        %p1705 = pneg %p1704
      $region54: #{tpu_custom_call.1} parent=5 // pred_check_branch
        %1707 = sbr.rel (%p1705) target = $region56
      $region55: #{tpu_custom_call.1} parent=5 // pred_region
        %s1708 = ssub.s32 %s17, 2
        // Predicated region
        $region57: #{tpu_custom_call.1} parent=55 // pred_check
          %p1709 = pneg %p154
        $region58: #{tpu_custom_call.1} parent=55 // pred_check_branch
          %1711 = sbr.rel (%p1709) target = $region60
        $region59: #{tpu_custom_call.1} parent=55 // pred_region
          %s1712 = sand.u32 %s139, 1
          %s1713 = scalar_lea.sflag [#allocation4], %s1712
          %s1714 = sand.u32 %s139, 1
          %s1715 = smul.addr %s1714, 256
          %s1716 = scalar_lea.vmem [#allocation8], %s1715
          %1717 = dma.done %s1713, 4096
        $region60: #{tpu_custom_call.1} parent=55 // pred_fallthru
          _
      $region56: #{tpu_custom_call.1} parent=5 // pred_fallthru
        _
    $region6: #{tpu_custom_call.1} parent=1 // loop_footer
      %s21 = sadd.s32 1, %s17
    $region7: #{tpu_custom_call.1} parent=1 // loop_footer_branch
      %16 = sbr.rel target = $region3
    $region8: #{tpu_custom_call.1} parent=1 // loop_exit
      _
    %1718 = vsyncpa [#allocation3], 1
    %s1719 = scalar_lea.sflag [#allocation3], 1
    %1720 = vsyncpa %s1719, 1
    %1721 = vsyncpa [#allocation6], 1
    %1722 = vsyncpa [#allocation4], 1
    %s1723 = scalar_lea.sflag [#allocation4], 1
    %1724 = vsyncpa %s1723, 1

</llo_original>
